<compile_context>
chip_gen: v7x
topology: tpu7x:2x2x1
jax: 0.10.0
libtpu: 0.0.40
codegen_flags: <defaults>
</compile_context>

<pallas_src>
import functools

import numpy as np
import jax
import jax.numpy as jnp
from jax.experimental import pallas as pl
from jax.experimental.pallas import tpu as pltpu

# ------------------------- configuration (small, consistent with module) ----
INCH = 4          # input channels
PSP_INCH = 32     # stands in for 2048 (must be divisible by len(LEVELS))
CLASS_NUM = 5
LEVELS = [1, 2, 3, 6]
MID_CH = 64       # stands in for 512 in Conv3x3_bn_relu(pspInch*2, 512)
BN_EPS = 1e-5

# Matmul tile caps.  256x256 output tiles match the v6e/v7x 2x256^2 MXU;
# on v5e (4x128^2 MXU) 128/128 is equally good — tiles auto-shrink to the
# problem size anyway at these shapes.  TK multiple of 128 (lane width).
TM_MAX, TN_MAX, TK_MAX = 256, 256, 512
VMEM_LIMIT = 48 * 1024 * 1024   # explicit scoped-VMEM budget (fits v7x 64 MiB)


def _round_up(x, m):
    return -(-x // m) * m


# ----------------------- Pallas kernel 1: K-tiled fused matmul ---------------
def _mm_bias_act_kernel(x_ref, w_ref, b_ref, o_ref, acc_ref, *, relu):
    # grid = (M tiles, N tiles, K steps); K is the innermost ("arbitrary") axis.
    k = pl.program_id(2)

    @pl.when(k == 0)
    def _():
        acc_ref[...] = jnp.zeros_like(acc_ref)

    acc_ref[...] += jnp.dot(x_ref[...], w_ref[...],
                            preferred_element_type=jnp.float32)

    @pl.when(k == pl.num_programs(2) - 1)
    def _():
        out = acc_ref[...] + b_ref[...]
        if relu:
            out = jnp.maximum(out, 0.0)
        o_ref[...] = out.astype(o_ref.dtype)


def fused_matmul(x, w, bias, relu):
    """relu?(x @ w + bias).  x:(M,K), w:(K,N) (BN scale pre-folded), bias:(N,).

    bf16 operands, f32 accumulation in VMEM scratch.  M and N are not padded
    (ragged edge blocks are masked by Pallas); K is zero-padded only when it
    has to be split into multiple reduction steps.
    """
    M, K = x.shape
    K2, N = w.shape
    assert K == K2

    tm = min(TM_MAX, _round_up(M, 8))
    tn = min(TN_MAX, _round_up(N, 128))
    if K <= TK_MAX:
        tk, Kp = K, K                          # single K step, no padding
        xk, wk = x, w
    else:
        tk = TK_MAX
        Kp = _round_up(K, tk)
        xk = jnp.pad(x, ((0, 0), (0, Kp - K)))
        wk = jnp.pad(w, ((0, Kp - K), (0, 0)))

    xb = xk.astype(jnp.bfloat16)
    wb = wk.astype(jnp.bfloat16)
    bb = bias.reshape(1, N).astype(jnp.float32)

    grid = (pl.cdiv(M, tm), pl.cdiv(N, tn), Kp // tk)
    kernel = functools.partial(_mm_bias_act_kernel, relu=relu)
    out = pl.pallas_call(
        kernel,
        out_shape=jax.ShapeDtypeStruct((M, N), jnp.float32),
        grid=grid,
        in_specs=[
            pl.BlockSpec((tm, tk), lambda i, j, k: (i, k)),
            pl.BlockSpec((tk, tn), lambda i, j, k: (k, j)),
            pl.BlockSpec((1, tn), lambda i, j, k: (0, j)),
        ],
        out_specs=pl.BlockSpec((tm, tn), lambda i, j, k: (i, j)),
        scratch_shapes=[pltpu.VMEM((tm, tn), jnp.float32)],
        compiler_params=pltpu.CompilerParams(
            dimension_semantics=("parallel", "parallel", "arbitrary"),
            vmem_limit_bytes=VMEM_LIMIT),
    )(xb, wb, bb)
    return out


# -------------- Pallas kernel 2: 3x3 conv (stride 1, pad 1), no im2col -------
def _conv3x3_kernel(x_ref, w_ref, b_ref, o_ref, acc_ref, *, relu):
    # grid = (N, H_out, 3 vertical taps).  x block = one padded input row.
    d = pl.program_id(2)              # vertical tap di in {0,1,2}
    wo = acc_ref.shape[0]             # output width

    @pl.when(d == 0)
    def _():
        acc_ref[...] = jnp.zeros_like(acc_ref)

    acc = acc_ref[...]
    for dj in range(3):               # horizontal taps: static slices, free views
        xs = x_ref[0, 0, dj:dj + wo, :]                    # (Wo, C)
        wt = w_ref[d * 3 + dj]                             # (C, O)
        acc = acc + jnp.dot(xs, wt, preferred_element_type=jnp.float32)
    acc_ref[...] = acc

    @pl.when(d == 2)
    def _():
        out = acc_ref[...] + b_ref[...]
        if relu:
            out = jnp.maximum(out, 0.0)
        o_ref[0, 0] = out.astype(o_ref.dtype)


def conv3x3_nhwc(x, w, conv_b, bn_scale, bn_bias, relu):
    """3x3 conv, stride 1, padding 1, NHWC, + folded BN affine + optional ReLU.

    w is the PyTorch (O, C, 3, 3) weight.  No im2col patch tensor is built:
    each grid step DMAs one padded input row and accumulates the 9 taps.
    TODO(synk): at production scale the (9, C, O) weight should also be
    K-tiled and the row window DMA'd from HBM in halo bands.
    """
    N, H, W, C = x.shape
    O = w.shape[0]
    # (O,C,3,3) -> (3,3,C,O) -> (9,C,O), BN scale folded into output channels.
    w9 = (w.transpose(2, 3, 1, 0).reshape(9, C, O)
          * bn_scale[None, None, :]).astype(jnp.bfloat16)
    bias = (bn_bias + conv_b * bn_scale).reshape(1, O).astype(jnp.float32)
    xp = jnp.pad(x.astype(jnp.bfloat16), ((0, 0), (1, 1), (1, 1), (0, 0)))

    kernel = functools.partial(_conv3x3_kernel, relu=relu)
    out = pl.pallas_call(
        kernel,
        out_shape=jax.ShapeDtypeStruct((N, H, W, O), jnp.float32),
        grid=(N, H, 3),
        in_specs=[
            # one padded input row per step, shifted by the vertical tap d
            pl.BlockSpec((1, 1, W + 2, C), lambda n, h, d: (n, h + d, 0, 0)),
            # full weight, resident in VMEM across the whole grid
            pl.BlockSpec((9, C, O), lambda n, h, d: (0, 0, 0)),
            pl.BlockSpec((1, O), lambda n, h, d: (0, 0)),
        ],
        out_specs=pl.BlockSpec((1, 1, W, O), lambda n, h, d: (n, h, 0, 0)),
        scratch_shapes=[pltpu.VMEM((W, O), jnp.float32)],
        compiler_params=pltpu.CompilerParams(
            dimension_semantics=("parallel", "parallel", "arbitrary"),
            vmem_limit_bytes=VMEM_LIMIT),
    )(xp, w9, bias)
    return out


# ----------------------------- conv wrappers (NHWC) --------------------------
def conv1x1_nhwc(x, w, conv_b, bn_scale, bn_bias, relu):
    """1x1 conv + folded BN affine + optional ReLU via the fused matmul."""
    N, H, W, C = x.shape
    O = w.shape[0]
    wm = w.reshape(O, C).T * bn_scale[None, :]   # fold BN scale into weights
    bias = bn_bias + conv_b * bn_scale
    out = fused_matmul(x.reshape(N * H * W, C), wm, bias, relu)
    return out.reshape(N, H, W, O)


# ------------------- adaptive-pool / bilinear (glue, exact) ------------------
def adaptive_pool_matrix(in_size, out_size):
    P = np.zeros((out_size, in_size), np.float32)
    for i in range(out_size):
        start = (i * in_size) // out_size
        end = -((-(i + 1) * in_size) // out_size)
        P[i, start:end] = 1.0 / (end - start)
    return jnp.asarray(P)


def bilinear_matrix(in_size, out_size):
    """align_corners=True interpolation matrix (out_size, in_size)."""
    A = np.zeros((out_size, in_size), np.float32)
    if in_size == 1:
        A[:, 0] = 1.0
    elif out_size == 1:
        A[0, 0] = 1.0
    else:
        scale = (in_size - 1) / (out_size - 1)
        for i in range(out_size):
            src = i * scale
            lo = int(np.floor(src))
            hi = min(lo + 1, in_size - 1)
            frac = src - lo
            A[i, lo] += 1.0 - frac
            A[i, hi] += frac
    return jnp.asarray(A)


def adaptive_avg_pool_nhwc(x, level):
    h, w = x.shape[1], x.shape[2]
    Ph = adaptive_pool_matrix(h, level)
    Pw = adaptive_pool_matrix(w, level)
    return jnp.einsum('nhwc,ph,qw->npqc', x, Ph, Pw)


def bilinear_resize_nhwc(x, out_h, out_w):
    h, w = x.shape[1], x.shape[2]
    Ah = bilinear_matrix(h, out_h)
    Aw = bilinear_matrix(w, out_w)
    return jnp.einsum('npqc,hp,wq->nhwc', x, Ah, Aw)


# ------------------------------- parameters ----------------------------------
def init_params(key):
    outch = PSP_INCH // len(LEVELS)
    ks = jax.random.split(key, 32)
    ki = iter(range(32))
    nrm = lambda shape: 0.05 * jax.random.normal(ks[next(ki)], shape, jnp.float32)

    params = {
        # backbone stand-in: stride-2 subsample + 1x1 conv inch -> pspInch
        'bb_w': nrm((PSP_INCH, INCH, 1, 1)),
        'bb_b': nrm((PSP_INCH,)),
        'stages': [],
        # Conv3x3_bn_relu(pspInch*2, MID_CH)
        'c1_w': nrm((MID_CH, PSP_INCH * 2, 3, 3)),
        'c1_b': nrm((MID_CH,)),
        'c1_gamma': 1.0 + nrm((MID_CH,)),
        'c1_beta': nrm((MID_CH,)),
        # conv2: 1x1, MID_CH -> classNum
        'c2_w': nrm((CLASS_NUM, MID_CH, 1, 1)),
        'c2_b': nrm((CLASS_NUM,)),
    }
    for level in LEVELS:
        st = {
            'w': nrm((outch, PSP_INCH, 1, 1)),
            'b': nrm((outch,)),
        }
        if level != 1:
            st['gamma'] = 1.0 + nrm((outch,))
            st['beta'] = nrm((outch,))
        params['stages'].append(st)
    return params


def bn_affine(gamma, beta):
    # eval-mode BatchNorm with running_mean=0, running_var=1 (see TODO at top)
    scale = gamma / jnp.sqrt(1.0 + BN_EPS)
    return scale, beta


# ------------------------------ PSP stages (batched) -------------------------
def psp_stages(feat, stage_params):
    """All four pool->1x1conv(+BN)->ReLU stages as ONE fused matmul call."""
    N = feat.shape[0]
    C = feat.shape[-1]
    rows, w_cols, b_cols, meta = [], [], [], []
    for level, st in zip(LEVELS, stage_params):
        pooled = adaptive_avg_pool_nhwc(feat, level)       # (N, level, level, C)
        rows.append(pooled.reshape(N * level * level, C))
        if level != 1:
            scale, beta = bn_affine(st['gamma'], st['beta'])
        else:
            scale = jnp.ones_like(st['b'])
            beta = jnp.zeros_like(st['b'])
        O = st['w'].shape[0]
        w_cols.append(st['w'].reshape(O, C).T * scale[None, :])
        b_cols.append(beta + st['b'] * scale)
        meta.append((level, O))

    xm = jnp.concatenate(rows, axis=0)                     # (sum_M, C)
    wm = jnp.concatenate(w_cols, axis=1)                   # (C, 4*outch)
    bm = jnp.concatenate(b_cols, axis=0)                   # (4*outch,)
    out = fused_matmul(xm, wm, bm, relu=True)              # (sum_M, 4*outch)

    ys, r0, c0 = [], 0, 0
    for level, O in meta:
        rN = N * level * level
        ys.append(out[r0:r0 + rN, c0:c0 + O].reshape(N, level, level, O))
        r0 += rN
        c0 += O
    return ys


# ------------------------------- forward -------------------------------------
def pspnet_forward(x_nchw, params):
    N, C, H, W = x_nchw.shape
    x = x_nchw.transpose(0, 2, 3, 1)           # NCHW -> NHWC once at boundary

    # backbone stand-in (see TODO at top): subsample x2 + 1x1 conv + ReLU
    ones = jnp.ones((PSP_INCH,), jnp.float32)
    zeros = jnp.zeros((PSP_INCH,), jnp.float32)
    feat = conv1x1_nhwc(x[:, ::2, ::2, :], params['bb_w'], params['bb_b'],
                        ones, zeros, relu=True)            # (N, h, w, pspInch)
    h, w = feat.shape[1], feat.shape[2]

    # PSP stages: pool -> 1x1 conv (+BN) -> ReLU (one matmul) -> upsample
    ys = psp_stages(feat, params['stages'])
    ups = [bilinear_resize_nhwc(y, h, w) for y in ys]
    x1 = jnp.concatenate(ups + [feat], axis=-1)            # (N, h, w, 2*pspInch)
    x1 = bilinear_resize_nhwc(x1, H, W)                    # back to input size

    # Conv3x3_bn_relu(pspInch*2 -> MID_CH)
    s1, b1 = bn_affine(params['c1_gamma'], params['c1_beta'])
    x1 = conv3x3_nhwc(x1, params['c1_w'], params['c1_b'], s1, b1, relu=True)

    # final 1x1 conv -> classNum
    ones_c = jnp.ones((CLASS_NUM,), jnp.float32)
    zeros_c = jnp.zeros((CLASS_NUM,), jnp.float32)
    x1 = conv1x1_nhwc(x1, params['c2_w'], params['c2_b'], ones_c, zeros_c,
                      relu=False)
    return x1.transpose(0, 3, 1, 2)            # NHWC -> NCHW at the boundary


# --------------------------------- main ---------------------------------------
if __name__ == "__main__":
    key = jax.random.PRNGKey(0)
    kx, kp = jax.random.split(key)
    x = jax.random.normal(kx, (2, INCH, 16, 16), jnp.float32)
    params = init_params(kp)

    fwd = jax.jit(pspnet_forward)
    out = fwd(x, params)
    out = jax.block_until_ready(out)
    assert out.shape == (2, CLASS_NUM, 16, 16), out.shape
    assert jnp.all(jnp.isfinite(out))
    print("KERNEL_OK")
</pallas_src>

<mosaic_0001>
module attributes {stable_mosaic.version = 11 : i64} {
  func.func @_mm_bias_act_kernel(%arg0: i32, %arg1: i32, %arg2: i32, %arg3: memref<128x4xbf16, #tpu.memory_space<vmem>>, %arg4: memref<4x128xbf16, #tpu.memory_space<vmem>>, %arg5: memref<1x128xf32, #tpu.memory_space<vmem>>, %arg6: memref<128x128xf32, #tpu.memory_space<vmem>>, %arg7: memref<128x128xf32, #tpu.memory_space<vmem>>) attributes {dimension_semantics = [#tpu.dimension_semantics<parallel>, #tpu.dimension_semantics<parallel>, #tpu.dimension_semantics<arbitrary>], iteration_bounds = array<i64: 1, 1, 1>, scalar_prefetch = 0 : i64, scratch_operands = 1 : i64, tpu.core_type = #tpu.core_type<tc>, window_params = [{transform_indices = @transform_0, window_bounds = array<i64: 128, 4>}, {transform_indices = @transform_1, window_bounds = array<i64: 4, 128>}, {transform_indices = @transform_2, window_bounds = array<i64: 1, 128>}, {transform_indices = @transform_3, window_bounds = array<i64: 128, 128>}]} {
    %c0_i32 = arith.constant 0 : i32
    %0 = arith.cmpi eq, %arg2, %c0_i32 : i32
    %1 = arith.extui %0 : i1 to i32
    %c0_i32_0 = arith.constant 0 : i32
    %2 = arith.cmpi ne, %1, %c0_i32_0 : i32
    scf.if %2 {
      %cst_10 = arith.constant 0.000000e+00 : f32
      %12 = vector.broadcast %cst_10 : f32 to vector<128x128xf32>
      %c0_11 = arith.constant 0 : index
      %c0_12 = arith.constant 0 : index
      %13 = vector.load %arg7[%c0_11, %c0_12] : memref<128x128xf32, #tpu.memory_space<vmem>>, vector<128x128xf32>
      tpu.vector_store %arg7[%c0_11, %c0_12], %12 {strides = array<i32>} : memref<128x128xf32, #tpu.memory_space<vmem>>, vector<128x128xf32>,
    } else {
    }
    %c0 = arith.constant 0 : index
    %c0_1 = arith.constant 0 : index
    %3 = vector.load %arg7[%c0, %c0_1] : memref<128x128xf32, #tpu.memory_space<vmem>>, vector<128x128xf32>
    %c0_2 = arith.constant 0 : index
    %c0_3 = arith.constant 0 : index
    %4 = vector.load %arg3[%c0_2, %c0_3] : memref<128x4xbf16, #tpu.memory_space<vmem>>, vector<128x4xbf16>
    %c0_4 = arith.constant 0 : index
    %c0_5 = arith.constant 0 : index
    %5 = vector.load %arg4[%c0_4, %c0_5] : memref<4x128xbf16, #tpu.memory_space<vmem>>, vector<4x128xbf16>
    %cst = arith.constant dense<0.000000e+00> : vector<128x128xf32>
    %6 = tpu.matmul %4, %5, %cst {dimension_numbers = #tpu.dot_dimension_numbers<[1], [0], [0], [1], [0, 0, 1, 1], [], []>} : vector<128x4xbf16>, vector<4x128xbf16>, vector<128x128xf32> -> vector<128x128xf32>
    %7 = arith.addf %3, %6 : vector<128x128xf32>
    %c0_6 = arith.constant 0 : index
    %c0_7 = arith.constant 0 : index
    %8 = vector.load %arg7[%c0_6, %c0_7] : memref<128x128xf32, #tpu.memory_space<vmem>>, vector<128x128xf32>
    tpu.vector_store %arg7[%c0_6, %c0_7], %7 {strides = array<i32>} : memref<128x128xf32, #tpu.memory_space<vmem>>, vector<128x128xf32>,
    %c0_i32_8 = arith.constant 0 : i32
    %9 = arith.cmpi eq, %arg2, %c0_i32_8 : i32
    %10 = arith.extui %9 : i1 to i32
    %c0_i32_9 = arith.constant 0 : i32
    %11 = arith.cmpi ne, %10, %c0_i32_9 : i32
    scf.if %11 {
      %c0_10 = arith.constant 0 : index
      %c0_11 = arith.constant 0 : index
      %12 = vector.load %arg7[%c0_10, %c0_11] : memref<128x128xf32, #tpu.memory_space<vmem>>, vector<128x128xf32>
      %c0_12 = arith.constant 0 : index
      %c0_13 = arith.constant 0 : index
      %13 = vector.load %arg5[%c0_12, %c0_13] : memref<1x128xf32, #tpu.memory_space<vmem>>, vector<1x128xf32>
      %14 = vector.broadcast %13 : vector<1x128xf32> to vector<128x128xf32>
      %15 = arith.addf %12, %14 : vector<128x128xf32>
      %cst_14 = arith.constant 0.000000e+00 : f32
      %16 = vector.broadcast %cst_14 : f32 to vector<128x128xf32>
      %17 = arith.maximumf %15, %16 : vector<128x128xf32>
      %c0_15 = arith.constant 0 : index
      %c0_16 = arith.constant 0 : index
      %18 = vector.load %arg6[%c0_15, %c0_16] : memref<128x128xf32, #tpu.memory_space<vmem>>, vector<128x128xf32>
      tpu.vector_store %arg6[%c0_15, %c0_16], %17 {strides = array<i32>} : memref<128x128xf32, #tpu.memory_space<vmem>>, vector<128x128xf32>,
    } else {
    }
    return
  }
  func.func @transform_0(%arg0: i32, %arg1: i32, %arg2: i32) -> (i32, i32) {
    %c0_i32 = arith.constant 0 : i32
    return %arg0, %arg2 : i32, i32
  }
  func.func @transform_1(%arg0: i32, %arg1: i32, %arg2: i32) -> (i32, i32) {
    %c0_i32 = arith.constant 0 : i32
    return %arg2, %arg1 : i32, i32
  }
  func.func @transform_2(%arg0: i32, %arg1: i32, %arg2: i32) -> (i32, i32) {
    %c0_i32 = arith.constant 0 : i32
    %c0_i32_0 = arith.constant 0 : i32
    return %c0_i32, %arg1 : i32, i32
  }
  func.func @transform_3(%arg0: i32, %arg1: i32, %arg2: i32) -> (i32, i32) {
    %c0_i32 = arith.constant 0 : i32
    return %arg0, %arg1 : i32, i32
  }
}

module attributes {stable_mosaic.version = 11 : i64} {
  func.func @_mm_bias_act_kernel(%arg0: i32, %arg1: i32, %arg2: i32, %arg3: memref<104x32xbf16, #tpu.memory_space<vmem>>, %arg4: memref<32x128xbf16, #tpu.memory_space<vmem>>, %arg5: memref<1x128xf32, #tpu.memory_space<vmem>>, %arg6: memref<104x128xf32, #tpu.memory_space<vmem>>, %arg7: memref<104x128xf32, #tpu.memory_space<vmem>>) attributes {dimension_semantics = [#tpu.dimension_semantics<parallel>, #tpu.dimension_semantics<parallel>, #tpu.dimension_semantics<arbitrary>], iteration_bounds = array<i64: 1, 1, 1>, scalar_prefetch = 0 : i64, scratch_operands = 1 : i64, tpu.core_type = #tpu.core_type<tc>, window_params = [{transform_indices = @transform_0, window_bounds = array<i64: 104, 32>}, {transform_indices = @transform_1, window_bounds = array<i64: 32, 128>}, {transform_indices = @transform_2, window_bounds = array<i64: 1, 128>}, {transform_indices = @transform_3, window_bounds = array<i64: 104, 128>}]} {
    %c0_i32 = arith.constant 0 : i32
    %0 = arith.cmpi eq, %arg2, %c0_i32 : i32
    %1 = arith.extui %0 : i1 to i32
    %c0_i32_0 = arith.constant 0 : i32
    %2 = arith.cmpi ne, %1, %c0_i32_0 : i32
    scf.if %2 {
      %cst_10 = arith.constant 0.000000e+00 : f32
      %12 = vector.broadcast %cst_10 : f32 to vector<104x128xf32>
      %c0_11 = arith.constant 0 : index
      %c0_12 = arith.constant 0 : index
      %13 = vector.load %arg7[%c0_11, %c0_12] : memref<104x128xf32, #tpu.memory_space<vmem>>, vector<104x128xf32>
      tpu.vector_store %arg7[%c0_11, %c0_12], %12 {strides = array<i32>} : memref<104x128xf32, #tpu.memory_space<vmem>>, vector<104x128xf32>,
    } else {
    }
    %c0 = arith.constant 0 : index
    %c0_1 = arith.constant 0 : index
    %3 = vector.load %arg7[%c0, %c0_1] : memref<104x128xf32, #tpu.memory_space<vmem>>, vector<104x128xf32>
    %c0_2 = arith.constant 0 : index
    %c0_3 = arith.constant 0 : index
    %4 = vector.load %arg3[%c0_2, %c0_3] : memref<104x32xbf16, #tpu.memory_space<vmem>>, vector<104x32xbf16>
    %c0_4 = arith.constant 0 : index
    %c0_5 = arith.constant 0 : index
    %5 = vector.load %arg4[%c0_4, %c0_5] : memref<32x128xbf16, #tpu.memory_space<vmem>>, vector<32x128xbf16>
    %cst = arith.constant dense<0.000000e+00> : vector<104x128xf32>
    %6 = tpu.matmul %4, %5, %cst {dimension_numbers = #tpu.dot_dimension_numbers<[1], [0], [0], [1], [0, 0, 1, 1], [], []>} : vector<104x32xbf16>, vector<32x128xbf16>, vector<104x128xf32> -> vector<104x128xf32>
    %7 = arith.addf %3, %6 : vector<104x128xf32>
    %c0_6 = arith.constant 0 : index
    %c0_7 = arith.constant 0 : index
    %8 = vector.load %arg7[%c0_6, %c0_7] : memref<104x128xf32, #tpu.memory_space<vmem>>, vector<104x128xf32>
    tpu.vector_store %arg7[%c0_6, %c0_7], %7 {strides = array<i32>} : memref<104x128xf32, #tpu.memory_space<vmem>>, vector<104x128xf32>,
    %c0_i32_8 = arith.constant 0 : i32
    %9 = arith.cmpi eq, %arg2, %c0_i32_8 : i32
    %10 = arith.extui %9 : i1 to i32
    %c0_i32_9 = arith.constant 0 : i32
    %11 = arith.cmpi ne, %10, %c0_i32_9 : i32
    scf.if %11 {
      %c0_10 = arith.constant 0 : index
      %c0_11 = arith.constant 0 : index
      %12 = vector.load %arg7[%c0_10, %c0_11] : memref<104x128xf32, #tpu.memory_space<vmem>>, vector<104x128xf32>
      %c0_12 = arith.constant 0 : index
      %c0_13 = arith.constant 0 : index
      %13 = vector.load %arg5[%c0_12, %c0_13] : memref<1x128xf32, #tpu.memory_space<vmem>>, vector<1x128xf32>
      %14 = vector.broadcast %13 : vector<1x128xf32> to vector<104x128xf32>
      %15 = arith.addf %12, %14 : vector<104x128xf32>
      %cst_14 = arith.constant 0.000000e+00 : f32
      %16 = vector.broadcast %cst_14 : f32 to vector<104x128xf32>
      %17 = arith.maximumf %15, %16 : vector<104x128xf32>
      %c0_15 = arith.constant 0 : index
      %c0_16 = arith.constant 0 : index
      %18 = vector.load %arg6[%c0_15, %c0_16] : memref<104x128xf32, #tpu.memory_space<vmem>>, vector<104x128xf32>
      tpu.vector_store %arg6[%c0_15, %c0_16], %17 {strides = array<i32>} : memref<104x128xf32, #tpu.memory_space<vmem>>, vector<104x128xf32>,
    } else {
    }
    return
  }
  func.func @transform_0(%arg0: i32, %arg1: i32, %arg2: i32) -> (i32, i32) {
    %c0_i32 = arith.constant 0 : i32
    return %arg0, %arg2 : i32, i32
  }
  func.func @transform_1(%arg0: i32, %arg1: i32, %arg2: i32) -> (i32, i32) {
    %c0_i32 = arith.constant 0 : i32
    return %arg2, %arg1 : i32, i32
  }
  func.func @transform_2(%arg0: i32, %arg1: i32, %arg2: i32) -> (i32, i32) {
    %c0_i32 = arith.constant 0 : i32
    %c0_i32_0 = arith.constant 0 : i32
    return %c0_i32, %arg1 : i32, i32
  }
  func.func @transform_3(%arg0: i32, %arg1: i32, %arg2: i32) -> (i32, i32) {
    %c0_i32 = arith.constant 0 : i32
    return %arg0, %arg1 : i32, i32
  }
}

module attributes {stable_mosaic.version = 11 : i64} {
  func.func @_conv3x3_kernel(%arg0: i32, %arg1: i32, %arg2: i32, %arg3: memref<1x1x18x64xbf16, #tpu.memory_space<vmem>>, %arg4: memref<9x64x64xbf16, #tpu.memory_space<vmem>>, %arg5: memref<1x64xf32, #tpu.memory_space<vmem>>, %arg6: memref<1x1x16x64xf32, #tpu.memory_space<vmem>>, %arg7: memref<16x64xf32, #tpu.memory_space<vmem>>) attributes {dimension_semantics = [#tpu.dimension_semantics<parallel>, #tpu.dimension_semantics<parallel>, #tpu.dimension_semantics<arbitrary>], iteration_bounds = array<i64: 2, 16, 3>, scalar_prefetch = 0 : i64, scratch_operands = 1 : i64, tpu.core_type = #tpu.core_type<tc>, window_params = [{transform_indices = @transform_0, window_bounds = array<i64: 1, 1, 18, 64>}, {pipeline_mode = #tpu.pipeline_mode<synchronous>, transform_indices = @transform_1, window_bounds = array<i64: 9, 64, 64>}, {pipeline_mode = #tpu.pipeline_mode<synchronous>, transform_indices = @transform_2, window_bounds = array<i64: 1, 64>}, {transform_indices = @transform_3, window_bounds = array<i64: 1, 1, 16, 64>}]} {
    %c0_i32 = arith.constant 0 : i32
    %0 = arith.cmpi eq, %arg2, %c0_i32 : i32
    %1 = arith.extui %0 : i1 to i32
    %c0_i32_0 = arith.constant 0 : i32
    %2 = arith.cmpi ne, %1, %c0_i32_0 : i32
    scf.if %2 {
      %cst_27 = arith.constant 0.000000e+00 : f32
      %35 = vector.broadcast %cst_27 : f32 to vector<16x64xf32>
      %c0_28 = arith.constant 0 : index
      %c0_29 = arith.constant 0 : index
      %36 = vector.load %arg7[%c0_28, %c0_29] : memref<16x64xf32, #tpu.memory_space<vmem>>, vector<16x64xf32>
      tpu.vector_store %arg7[%c0_28, %c0_29], %35 {strides = array<i32>} : memref<16x64xf32, #tpu.memory_space<vmem>>, vector<16x64xf32>,
    } else {
    }
    %c0 = arith.constant 0 : index
    %c0_1 = arith.constant 0 : index
    %3 = vector.load %arg7[%c0, %c0_1] : memref<16x64xf32, #tpu.memory_space<vmem>>, vector<16x64xf32>
    %c0_2 = arith.constant 0 : index
    %c0_3 = arith.constant 0 : index
    %c0_4 = arith.constant 0 : index
    %c0_5 = arith.constant 0 : index
    %4 = vector.load %arg3[%c0_2, %c0_3, %c0_4, %c0_5] : memref<1x1x18x64xbf16, #tpu.memory_space<vmem>>, vector<1x1x16x64xbf16>
    %5 = vector.shape_cast %4 : vector<1x1x16x64xbf16> to vector<16x64xbf16>
    %c3_i32 = arith.constant 3 : i32
    %6 = arith.muli %arg2, %c3_i32 : i32
    %c0_i32_6 = arith.constant 0 : i32
    %7 = arith.addi %6, %c0_i32_6 : i32
    %8 = arith.index_cast %7 : i32 to index
    %c0_7 = arith.constant 0 : index
    %c0_8 = arith.constant 0 : index
    %9 = vector.load %arg4[%8, %c0_7, %c0_8] : memref<9x64x64xbf16, #tpu.memory_space<vmem>>, vector<1x64x64xbf16>
    %10 = vector.shape_cast %9 : vector<1x64x64xbf16> to vector<64x64xbf16>
    %cst = arith.constant dense<0.000000e+00> : vector<16x64xf32>
    %11 = tpu.matmul %5, %10, %cst {dimension_numbers = #tpu.dot_dimension_numbers<[1], [0], [0], [1], [0, 0, 1, 1], [], []>} : vector<16x64xbf16>, vector<64x64xbf16>, vector<16x64xf32> -> vector<16x64xf32>
    %12 = arith.addf %3, %11 : vector<16x64xf32>
    %c0_9 = arith.constant 0 : index
    %c0_10 = arith.constant 0 : index
    %c1 = arith.constant 1 : index
    %c0_11 = arith.constant 0 : index
    %13 = vector.load %arg3[%c0_9, %c0_10, %c1, %c0_11] : memref<1x1x18x64xbf16, #tpu.memory_space<vmem>>, vector<1x1x16x64xbf16>
    %14 = vector.shape_cast %13 : vector<1x1x16x64xbf16> to vector<16x64xbf16>
    %c3_i32_12 = arith.constant 3 : i32
    %15 = arith.muli %arg2, %c3_i32_12 : i32
    %c1_i32 = arith.constant 1 : i32
    %16 = arith.addi %15, %c1_i32 : i32
    %17 = arith.index_cast %16 : i32 to index
    %c0_13 = arith.constant 0 : index
    %c0_14 = arith.constant 0 : index
    %18 = vector.load %arg4[%17, %c0_13, %c0_14] : memref<9x64x64xbf16, #tpu.memory_space<vmem>>, vector<1x64x64xbf16>
    %19 = vector.shape_cast %18 : vector<1x64x64xbf16> to vector<64x64xbf16>
    %cst_15 = arith.constant dense<0.000000e+00> : vector<16x64xf32>
    %20 = tpu.matmul %14, %19, %cst_15 {dimension_numbers = #tpu.dot_dimension_numbers<[1], [0], [0], [1], [0, 0, 1, 1], [], []>} : vector<16x64xbf16>, vector<64x64xbf16>, vector<16x64xf32> -> vector<16x64xf32>
    %21 = arith.addf %12, %20 : vector<16x64xf32>
    %c0_16 = arith.constant 0 : index
    %c0_17 = arith.constant 0 : index
    %c2 = arith.constant 2 : index
    %c0_18 = arith.constant 0 : index
    %22 = vector.load %arg3[%c0_16, %c0_17, %c2, %c0_18] : memref<1x1x18x64xbf16, #tpu.memory_space<vmem>>, vector<1x1x16x64xbf16>
    %23 = vector.shape_cast %22 : vector<1x1x16x64xbf16> to vector<16x64xbf16>
    %c3_i32_19 = arith.constant 3 : i32
    %24 = arith.muli %arg2, %c3_i32_19 : i32
    %c2_i32 = arith.constant 2 : i32
    %25 = arith.addi %24, %c2_i32 : i32
    %26 = arith.index_cast %25 : i32 to index
    %c0_20 = arith.constant 0 : index
    %c0_21 = arith.constant 0 : index
    %27 = vector.load %arg4[%26, %c0_20, %c0_21] : memref<9x64x64xbf16, #tpu.memory_space<vmem>>, vector<1x64x64xbf16>
    %28 = vector.shape_cast %27 : vector<1x64x64xbf16> to vector<64x64xbf16>
    %cst_22 = arith.constant dense<0.000000e+00> : vector<16x64xf32>
    %29 = tpu.matmul %23, %28, %cst_22 {dimension_numbers = #tpu.dot_dimension_numbers<[1], [0], [0], [1], [0, 0, 1, 1], [], []>} : vector<16x64xbf16>, vector<64x64xbf16>, vector<16x64xf32> -> vector<16x64xf32>
    %30 = arith.addf %21, %29 : vector<16x64xf32>
    %c0_23 = arith.constant 0 : index
    %c0_24 = arith.constant 0 : index
    %31 = vector.load %arg7[%c0_23, %c0_24] : memref<16x64xf32, #tpu.memory_space<vmem>>, vector<16x64xf32>
    tpu.vector_store %arg7[%c0_23, %c0_24], %30 {strides = array<i32>} : memref<16x64xf32, #tpu.memory_space<vmem>>, vector<16x64xf32>,
    %c2_i32_25 = arith.constant 2 : i32
    %32 = arith.cmpi eq, %arg2, %c2_i32_25 : i32
    %33 = arith.extui %32 : i1 to i32
    %c0_i32_26 = arith.constant 0 : i32
    %34 = arith.cmpi ne, %33, %c0_i32_26 : i32
    scf.if %34 {
      %c0_27 = arith.constant 0 : index
      %c0_28 = arith.constant 0 : index
      %35 = vector.load %arg7[%c0_27, %c0_28] : memref<16x64xf32, #tpu.memory_space<vmem>>, vector<16x64xf32>
      %c0_29 = arith.constant 0 : index
      %c0_30 = arith.constant 0 : index
      %36 = vector.load %arg5[%c0_29, %c0_30] : memref<1x64xf32, #tpu.memory_space<vmem>>, vector<1x64xf32>
      %37 = vector.broadcast %36 : vector<1x64xf32> to vector<16x64xf32>
      %38 = arith.addf %35, %37 : vector<16x64xf32>
      %cst_31 = arith.constant 0.000000e+00 : f32
      %39 = vector.broadcast %cst_31 : f32 to vector<16x64xf32>
      %40 = arith.maximumf %38, %39 : vector<16x64xf32>
      %c0_32 = arith.constant 0 : index
      %c0_33 = arith.constant 0 : index
      %c0_34 = arith.constant 0 : index
      %c0_35 = arith.constant 0 : index
      %41 = vector.load %arg6[%c0_32, %c0_33, %c0_34, %c0_35] : memref<1x1x16x64xf32, #tpu.memory_space<vmem>>, vector<1x1x16x64xf32>
      %42 = vector.shape_cast %41 : vector<1x1x16x64xf32> to vector<16x64xf32>
      %43 = vector.shape_cast %40 : vector<16x64xf32> to vector<1x1x16x64xf32>
      tpu.vector_store %arg6[%c0_32, %c0_33, %c0_34, %c0_35], %43 {strides = array<i32>} : memref<1x1x16x64xf32, #tpu.memory_space<vmem>>, vector<1x1x16x64xf32>,
    } else {
    }
    return
  }
  func.func @transform_0(%arg0: i32, %arg1: i32, %arg2: i32) -> (i32, i32, i32, i32) {
    %0 = arith.addi %arg1, %arg2 : i32
    %c0_i32 = arith.constant 0 : i32
    %c0_i32_0 = arith.constant 0 : i32
    %c0_i32_1 = arith.constant 0 : i32
    return %arg0, %0, %c0_i32, %c0_i32_0 : i32, i32, i32, i32
  }
  func.func @transform_1(%arg0: i32, %arg1: i32, %arg2: i32) -> (i32, i32, i32) {
    %c0_i32 = arith.constant 0 : i32
    %c0_i32_0 = arith.constant 0 : i32
    %c0_i32_1 = arith.constant 0 : i32
    %c0_i32_2 = arith.constant 0 : i32
    return %c0_i32, %c0_i32_0, %c0_i32_1 : i32, i32, i32
  }
  func.func @transform_2(%arg0: i32, %arg1: i32, %arg2: i32) -> (i32, i32) {
    %c0_i32 = arith.constant 0 : i32
    %c0_i32_0 = arith.constant 0 : i32
    %c0_i32_1 = arith.constant 0 : i32
    return %c0_i32, %c0_i32_0 : i32, i32
  }
  func.func @transform_3(%arg0: i32, %arg1: i32, %arg2: i32) -> (i32, i32, i32, i32) {
    %c0_i32 = arith.constant 0 : i32
    %c0_i32_0 = arith.constant 0 : i32
    %c0_i32_1 = arith.constant 0 : i32
    return %arg0, %arg1, %c0_i32, %c0_i32_0 : i32, i32, i32, i32
  }
}

module attributes {stable_mosaic.version = 11 : i64} {
  func.func @_mm_bias_act_kernel(%arg0: i32, %arg1: i32, %arg2: i32, %arg3: memref<256x64xbf16, #tpu.memory_space<vmem>>, %arg4: memref<64x128xbf16, #tpu.memory_space<vmem>>, %arg5: memref<1x128xf32, #tpu.memory_space<vmem>>, %arg6: memref<256x128xf32, #tpu.memory_space<vmem>>, %arg7: memref<256x128xf32, #tpu.memory_space<vmem>>) attributes {dimension_semantics = [#tpu.dimension_semantics<parallel>, #tpu.dimension_semantics<parallel>, #tpu.dimension_semantics<arbitrary>], iteration_bounds = array<i64: 2, 1, 1>, scalar_prefetch = 0 : i64, scratch_operands = 1 : i64, tpu.core_type = #tpu.core_type<tc>, window_params = [{transform_indices = @transform_0, window_bounds = array<i64: 256, 64>}, {transform_indices = @transform_1, window_bounds = array<i64: 64, 128>}, {transform_indices = @transform_2, window_bounds = array<i64: 1, 128>}, {transform_indices = @transform_3, window_bounds = array<i64: 256, 128>}]} {
    %c0_i32 = arith.constant 0 : i32
    %0 = arith.cmpi eq, %arg2, %c0_i32 : i32
    %1 = arith.extui %0 : i1 to i32
    %c0_i32_0 = arith.constant 0 : i32
    %2 = arith.cmpi ne, %1, %c0_i32_0 : i32
    scf.if %2 {
      %cst_10 = arith.constant 0.000000e+00 : f32
      %12 = vector.broadcast %cst_10 : f32 to vector<256x128xf32>
      %c0_11 = arith.constant 0 : index
      %c0_12 = arith.constant 0 : index
      %13 = vector.load %arg7[%c0_11, %c0_12] : memref<256x128xf32, #tpu.memory_space<vmem>>, vector<256x128xf32>
      tpu.vector_store %arg7[%c0_11, %c0_12], %12 {strides = array<i32>} : memref<256x128xf32, #tpu.memory_space<vmem>>, vector<256x128xf32>,
    } else {
    }
    %c0 = arith.constant 0 : index
    %c0_1 = arith.constant 0 : index
    %3 = vector.load %arg7[%c0, %c0_1] : memref<256x128xf32, #tpu.memory_space<vmem>>, vector<256x128xf32>
    %c0_2 = arith.constant 0 : index
    %c0_3 = arith.constant 0 : index
    %4 = vector.load %arg3[%c0_2, %c0_3] : memref<256x64xbf16, #tpu.memory_space<vmem>>, vector<256x64xbf16>
    %c0_4 = arith.constant 0 : index
    %c0_5 = arith.constant 0 : index
    %5 = vector.load %arg4[%c0_4, %c0_5] : memref<64x128xbf16, #tpu.memory_space<vmem>>, vector<64x128xbf16>
    %cst = arith.constant dense<0.000000e+00> : vector<256x128xf32>
    %6 = tpu.matmul %4, %5, %cst {dimension_numbers = #tpu.dot_dimension_numbers<[1], [0], [0], [1], [0, 0, 1, 1], [], []>} : vector<256x64xbf16>, vector<64x128xbf16>, vector<256x128xf32> -> vector<256x128xf32>
    %7 = arith.addf %3, %6 : vector<256x128xf32>
    %c0_6 = arith.constant 0 : index
    %c0_7 = arith.constant 0 : index
    %8 = vector.load %arg7[%c0_6, %c0_7] : memref<256x128xf32, #tpu.memory_space<vmem>>, vector<256x128xf32>
    tpu.vector_store %arg7[%c0_6, %c0_7], %7 {strides = array<i32>} : memref<256x128xf32, #tpu.memory_space<vmem>>, vector<256x128xf32>,
    %c0_i32_8 = arith.constant 0 : i32
    %9 = arith.cmpi eq, %arg2, %c0_i32_8 : i32
    %10 = arith.extui %9 : i1 to i32
    %c0_i32_9 = arith.constant 0 : i32
    %11 = arith.cmpi ne, %10, %c0_i32_9 : i32
    scf.if %11 {
      %c0_10 = arith.constant 0 : index
      %c0_11 = arith.constant 0 : index
      %12 = vector.load %arg7[%c0_10, %c0_11] : memref<256x128xf32, #tpu.memory_space<vmem>>, vector<256x128xf32>
      %c0_12 = arith.constant 0 : index
      %c0_13 = arith.constant 0 : index
      %13 = vector.load %arg5[%c0_12, %c0_13] : memref<1x128xf32, #tpu.memory_space<vmem>>, vector<1x128xf32>
      %14 = vector.broadcast %13 : vector<1x128xf32> to vector<256x128xf32>
      %15 = arith.addf %12, %14 : vector<256x128xf32>
      %c0_14 = arith.constant 0 : index
      %c0_15 = arith.constant 0 : index
      %16 = vector.load %arg6[%c0_14, %c0_15] : memref<256x128xf32, #tpu.memory_space<vmem>>, vector<256x128xf32>
      tpu.vector_store %arg6[%c0_14, %c0_15], %15 {strides = array<i32>} : memref<256x128xf32, #tpu.memory_space<vmem>>, vector<256x128xf32>,
    } else {
    }
    return
  }
  func.func @transform_0(%arg0: i32, %arg1: i32, %arg2: i32) -> (i32, i32) {
    %c0_i32 = arith.constant 0 : i32
    return %arg0, %arg2 : i32, i32
  }
  func.func @transform_1(%arg0: i32, %arg1: i32, %arg2: i32) -> (i32, i32) {
    %c0_i32 = arith.constant 0 : i32
    return %arg2, %arg1 : i32, i32
  }
  func.func @transform_2(%arg0: i32, %arg1: i32, %arg2: i32) -> (i32, i32) {
    %c0_i32 = arith.constant 0 : i32
    %c0_i32_0 = arith.constant 0 : i32
    return %c0_i32, %arg1 : i32, i32
  }
  func.func @transform_3(%arg0: i32, %arg1: i32, %arg2: i32) -> (i32, i32) {
    %c0_i32 = arith.constant 0 : i32
    return %arg0, %arg1 : i32, i32
  }
}

</mosaic_0001>

<llo_original>
// kernel: pspnet_forward.4
$region0: #{pspnet_forward.4}
  #allocation0 [shape = 'u32[]', space=smem, size = 0x4, offset = 0x4, fixed_abs, tag = 'smem constant byte address 0x4 - core index']
  #allocation1 [shape = 'u32[144,128]{1,0:T(1,128)}', space=vmem, size = 0x12000, scoped, tag = 'internal scratch']
  #allocation2 [shape = 'f32[128,128]{1,0:T(8,128)}', space=vmem, size = 0x10000, scoped, tag = 'scratch operand']
  %s0 = inlined_call_operand.vmem [shape: bf16[128,4], index: 0, kind: input, shape index: {}]
  %s1 = inlined_call_operand.vmem [shape: bf16[4,32], index: 1, kind: input, shape index: {}]
  %s2 = inlined_call_operand.vmem [shape: f32[1,32], index: 2, kind: input, shape index: {}]
  %s3 = inlined_call_operand.vmem [shape: f32[128,32], index: 3, kind: output, shape index: {}]
  %s4 = sld [smem:[#allocation0]]
  $region30: #{pspnet_forward.4} parent=0
    _
  %s6 = ssub.s32 1, %s4
  %s7 = scalar_select 0, %s6, %s4
  // Predicated region
  $region2: #{pspnet_forward.4} parent=0 // pred_check
    _
  $region3: #{pspnet_forward.4} parent=0 // pred_check_branch
    %9 = sbr.rel (0) target = $region5
  $region4: #{pspnet_forward.4} parent=0 // pred_region
    _
  $region5: #{pspnet_forward.4} parent=0 // pred_fallthru
    _
  // Predicated region
  $region6: #{pspnet_forward.4} parent=0 // pred_check
    _
  $region7: #{pspnet_forward.4} parent=0 // pred_check_branch
    %11 = sbr.rel (0) target = $region9
  $region8: #{pspnet_forward.4} parent=0 // pred_region
    _
  $region9: #{pspnet_forward.4} parent=0 // pred_fallthru
    _
  // Predicated region
  $region10: #{pspnet_forward.4} parent=0 // pred_check
    _
  $region11: #{pspnet_forward.4} parent=0 // pred_check_branch
    %13 = sbr.rel (0) target = $region13
  $region12: #{pspnet_forward.4} parent=0 // pred_region
    _
  $region13: #{pspnet_forward.4} parent=0 // pred_fallthru
    _
  %p15 = scmp.eq.s32.totalorder 0, 0
  // Predicated region
  $region14: #{pspnet_forward.4} parent=0 // pred_check
    %p16 = pneg %p15
  $region15: #{pspnet_forward.4} parent=0 // pred_check_branch
    %18 = sbr.rel (%p16) target = $region17
  $region16: #{pspnet_forward.4} parent=0 // pred_region
    %19 = vst [vmem:[#allocation2] sm:$0xff] 0.0
    %20 = vst [vmem:[#allocation2 + $0x8] sm:$0xff] 0.0
    %21 = vst [vmem:[#allocation2 + $0x10] sm:$0xff] 0.0
    %22 = vst [vmem:[#allocation2 + $0x18] sm:$0xff] 0.0
    %23 = vst [vmem:[#allocation2 + $0x20] sm:$0xff] 0.0
    %24 = vst [vmem:[#allocation2 + $0x28] sm:$0xff] 0.0
    %25 = vst [vmem:[#allocation2 + $0x30] sm:$0xff] 0.0
    %26 = vst [vmem:[#allocation2 + $0x38] sm:$0xff] 0.0
    %27 = vst [vmem:[#allocation2 + $0x40] sm:$0xff] 0.0
    %28 = vst [vmem:[#allocation2 + $0x48] sm:$0xff] 0.0
    %29 = vst [vmem:[#allocation2 + $0x50] sm:$0xff] 0.0
    %30 = vst [vmem:[#allocation2 + $0x58] sm:$0xff] 0.0
    %31 = vst [vmem:[#allocation2 + $0x60] sm:$0xff] 0.0
    %32 = vst [vmem:[#allocation2 + $0x68] sm:$0xff] 0.0
    %33 = vst [vmem:[#allocation2 + $0x70] sm:$0xff] 0.0
    %34 = vst [vmem:[#allocation2 + $0x78] sm:$0xff] 0.0
  $region17: #{pspnet_forward.4} parent=0 // pred_fallthru
    _
  %v35 = vld [vmem:[#allocation2] sm:$0xff]
  %v36 = vld [vmem:[#allocation2 + $0x8] sm:$0xff]
  %v37 = vld [vmem:[#allocation2 + $0x10] sm:$0xff]
  %v38 = vld [vmem:[#allocation2 + $0x18] sm:$0xff]
  %v39 = vld [vmem:[#allocation2 + $0x20] sm:$0xff]
  %v40 = vld [vmem:[#allocation2 + $0x28] sm:$0xff]
  %v41 = vld [vmem:[#allocation2 + $0x30] sm:$0xff]
  %v42 = vld [vmem:[#allocation2 + $0x38] sm:$0xff]
  %v43 = vld [vmem:[#allocation2 + $0x40] sm:$0xff]
  %v44 = vld [vmem:[#allocation2 + $0x48] sm:$0xff]
  %v45 = vld [vmem:[#allocation2 + $0x50] sm:$0xff]
  %v46 = vld [vmem:[#allocation2 + $0x58] sm:$0xff]
  %v47 = vld [vmem:[#allocation2 + $0x60] sm:$0xff]
  %v48 = vld [vmem:[#allocation2 + $0x68] sm:$0xff]
  %v49 = vld [vmem:[#allocation2 + $0x70] sm:$0xff]
  %v50 = vld [vmem:[#allocation2 + $0x78] sm:$0xff]
  %v51 = vld [vmem:[%s0] sm:$0xf]
  %v52 = vld [vmem:[%s0 + $0x4] sm:$0xf]
  %v53 = vld [vmem:[%s0 + $0x8] sm:$0xf]
  %v54 = vld [vmem:[%s0 + $0xc] sm:$0xf]
  %v55 = vld [vmem:[%s0 + $0x10] sm:$0xf]
  %v56 = vld [vmem:[%s0 + $0x14] sm:$0xf]
  %v57 = vld [vmem:[%s0 + $0x18] sm:$0xf]
  %v58 = vld [vmem:[%s0 + $0x1c] sm:$0xf]
  %v59 = vld [vmem:[%s0 + $0x20] sm:$0xf]
  %v60 = vld [vmem:[%s0 + $0x24] sm:$0xf]
  %v61 = vld [vmem:[%s0 + $0x28] sm:$0xf]
  %v62 = vld [vmem:[%s0 + $0x2c] sm:$0xf]
  %v63 = vld [vmem:[%s0 + $0x30] sm:$0xf]
  %v64 = vld [vmem:[%s0 + $0x34] sm:$0xf]
  %v65 = vld [vmem:[%s0 + $0x38] sm:$0xf]
  %v66 = vld [vmem:[%s0 + $0x3c] sm:$0xf]
  %v67 = vld [vmem:[%s1] sm:$0x3]
  %v84 = vunpack.c.l.b16 %v51
  %v85 = vunpack.c.l.b16 %v52
  %v86 = vunpack.c.l.b16 %v53
  %v87 = vunpack.c.l.b16 %v54
  %v88 = vunpack.c.l.b16 %v55
  %v89 = vunpack.c.l.b16 %v56
  %v90 = vunpack.c.l.b16 %v57
  %v91 = vunpack.c.l.b16 %v58
  %v92 = vunpack.c.l.b16 %v59
  %v93 = vunpack.c.l.b16 %v60
  %v94 = vunpack.c.l.b16 %v61
  %v95 = vunpack.c.l.b16 %v62
  %v96 = vunpack.c.l.b16 %v63
  %v97 = vunpack.c.l.b16 %v64
  %v98 = vunpack.c.l.b16 %v65
  %v99 = vunpack.c.l.b16 %v66
  %v100 = vpack.c.b16 %v85, %v84
  %v101 = vpack.c.b16 %v87, %v86
  %v102 = vpack.c.b16 %v89, %v88
  %v103 = vpack.c.b16 %v91, %v90
  %v104 = vpack.c.b16 %v93, %v92
  %v105 = vpack.c.b16 %v95, %v94
  %v106 = vpack.c.b16 %v97, %v96
  %v107 = vpack.c.b16 %v99, %v98
  %vm108 = vcmask 31744
  %v110 = vsel %vm108, %v100, 0
  %v113 = vsel %vm108, %v101, 0
  %v116 = vsel %vm108, %v102, 0
  %v119 = vsel %vm108, %v103, 0
  %v122 = vsel %vm108, %v104, 0
  %v125 = vsel %vm108, %v105, 0
  %v128 = vsel %vm108, %v106, 0
  %v131 = vsel %vm108, %v107, 0
  %vm133 = vcmask 1041408
  %v135 = vsel %vm133, %v67, 0
  %137 = vmatprep.subr.bf16.mxu0 0
  %138 = vmatpush1.bf16.msra.mxu0 %v135
  %139 = vmatprep.subr.bf16.mxu0 0
  %140 = vmatpush1.bf16.msra.mxu0 0
  %141 = vmatprep.subr.bf16.mxu0 0
  %142 = vmatpush1.bf16.msra.mxu0 0
  %143 = vmatprep.subr.bf16.mxu0 0
  %144 = vmatpush1.bf16.msra.mxu0 0
  %145 = vmatprep.subr.bf16.mxu0 0
  %146 = vmatpush1.bf16.msra.mxu0 0
  %147 = vmatprep.subr.bf16.mxu0 0
  %148 = vmatpush1.bf16.msra.mxu0 0
  %149 = vmatprep.subr.bf16.mxu0 0
  %150 = vmatpush1.bf16.msra.mxu0 0
  %151 = vmatprep.subr.bf16.mxu0 0
  %152 = vmatpush1.bf16.msra.mxu0 0
  %153 = vmatprep.subr.bf16.mxu0 0
  %154 = vmatpush1.bf16.msra.mxu0 0
  %155 = vmatprep.subr.bf16.mxu0 0
  %156 = vmatpush1.bf16.msra.mxu0 0
  %157 = vmatprep.subr.bf16.mxu0 0
  %158 = vmatpush1.bf16.msra.mxu0 0
  %159 = vmatprep.subr.bf16.mxu0 0
  %160 = vmatpush1.bf16.msra.mxu0 0
  %161 = vmatprep.subr.bf16.mxu0 0
  %162 = vmatpush1.bf16.msra.mxu0 0
  %163 = vmatprep.subr.bf16.mxu0 0
  %164 = vmatpush1.bf16.msra.mxu0 0
  %165 = vmatprep.subr.bf16.mxu0 0
  %166 = vmatpush1.bf16.msra.mxu0 0
  %167 = vmatprep.subr.bf16.mxu0 0
  %168 = vmatpush1.bf16.msra.mxu0 0
  %169 = vmatprep.mubr.bf16.mxu0 0
  %170 = vmatmul.mubr.bf16.gmra.mrb[0].mxu0 %v110
  %v171 = vpop.f32.mrb[0].mxu0
  %v172 = vadd.f32 0.0, %v171
  %v173 = vpop.f32.mrb[0].mxu0
  %v174 = vpop.f32.mrb[0].mxu0
  %v175 = vadd.f32 0.0, %v174
  %v176 = vpop.f32.mrb[0].mxu0
  %177 = vmatprep.mubr.bf16.mxu0 0
  %178 = vmatmul.mubr.bf16.gmra.mrb[0].mxu0 %v113
  %v179 = vpop.f32.mrb[0].mxu0
  %v180 = vadd.f32 0.0, %v179
  %v181 = vpop.f32.mrb[0].mxu0
  %v182 = vpop.f32.mrb[0].mxu0
  %v183 = vadd.f32 0.0, %v182
  %v184 = vpop.f32.mrb[0].mxu0
  %185 = vmatprep.mubr.bf16.mxu0 0
  %186 = vmatmul.mubr.bf16.gmra.mrb[0].mxu0 %v116
  %v187 = vpop.f32.mrb[0].mxu0
  %v188 = vadd.f32 0.0, %v187
  %v189 = vpop.f32.mrb[0].mxu0
  %v190 = vpop.f32.mrb[0].mxu0
  %v191 = vadd.f32 0.0, %v190
  %v192 = vpop.f32.mrb[0].mxu0
  %193 = vmatprep.mubr.bf16.mxu0 0
  %194 = vmatmul.mubr.bf16.gmra.mrb[0].mxu0 %v119
  %v195 = vpop.f32.mrb[0].mxu0
  %v196 = vadd.f32 0.0, %v195
  %v197 = vpop.f32.mrb[0].mxu0
  %v198 = vpop.f32.mrb[0].mxu0
  %v199 = vadd.f32 0.0, %v198
  %v200 = vpop.f32.mrb[0].mxu0
  %201 = vmatprep.mubr.bf16.mxu0 0
  %202 = vmatmul.mubr.bf16.gmra.mrb[0].mxu0 %v122
  %v203 = vpop.f32.mrb[0].mxu0
  %v204 = vadd.f32 0.0, %v203
  %v205 = vpop.f32.mrb[0].mxu0
  %v206 = vpop.f32.mrb[0].mxu0
  %v207 = vadd.f32 0.0, %v206
  %v208 = vpop.f32.mrb[0].mxu0
  %209 = vmatprep.mubr.bf16.mxu0 0
  %210 = vmatmul.mubr.bf16.gmra.mrb[0].mxu0 %v125
  %v211 = vpop.f32.mrb[0].mxu0
  %v212 = vadd.f32 0.0, %v211
  %v213 = vpop.f32.mrb[0].mxu0
  %v214 = vpop.f32.mrb[0].mxu0
  %v215 = vadd.f32 0.0, %v214
  %v216 = vpop.f32.mrb[0].mxu0
  %217 = vmatprep.mubr.bf16.mxu0 0
  %218 = vmatmul.mubr.bf16.gmra.mrb[0].mxu0 %v128
  %v219 = vpop.f32.mrb[0].mxu0
  %v220 = vadd.f32 0.0, %v219
  %v221 = vpop.f32.mrb[0].mxu0
  %v222 = vpop.f32.mrb[0].mxu0
  %v223 = vadd.f32 0.0, %v222
  %v224 = vpop.f32.mrb[0].mxu0
  %225 = vmatprep.mubr.bf16.mxu0 0
  %226 = vmatmul.mubr.bf16.gmra.mrb[0].mxu0 %v131
  %v227 = vpop.f32.mrb[0].mxu0
  %v228 = vadd.f32 0.0, %v227
  %v229 = vpop.f32.mrb[0].mxu0
  %v230 = vpop.f32.mrb[0].mxu0
  %v231 = vadd.f32 0.0, %v230
  %v232 = vpop.f32.mrb[0].mxu0
  %233 = vdwg.mxu0
  %v234 = vadd.f32 %v35, %v172
  %v235 = vadd.f32 %v36, %v175
  %v236 = vadd.f32 %v37, %v180
  %v237 = vadd.f32 %v38, %v183
  %v238 = vadd.f32 %v39, %v188
  %v239 = vadd.f32 %v40, %v191
  %v240 = vadd.f32 %v41, %v196
  %v241 = vadd.f32 %v42, %v199
  %v242 = vadd.f32 %v43, %v204
  %v243 = vadd.f32 %v44, %v207
  %v244 = vadd.f32 %v45, %v212
  %v245 = vadd.f32 %v46, %v215
  %v246 = vadd.f32 %v47, %v220
  %v247 = vadd.f32 %v48, %v223
  %v248 = vadd.f32 %v49, %v228
  %v249 = vadd.f32 %v50, %v231
  %250 = vst [vmem:[#allocation2] sm:$0xff] %v234
  %251 = vst [vmem:[#allocation2 + $0x8] sm:$0xff] %v235
  %252 = vst [vmem:[#allocation2 + $0x10] sm:$0xff] %v236
  %253 = vst [vmem:[#allocation2 + $0x18] sm:$0xff] %v237
  %254 = vst [vmem:[#allocation2 + $0x20] sm:$0xff] %v238
  %255 = vst [vmem:[#allocation2 + $0x28] sm:$0xff] %v239
  %256 = vst [vmem:[#allocation2 + $0x30] sm:$0xff] %v240
  %257 = vst [vmem:[#allocation2 + $0x38] sm:$0xff] %v241
  %258 = vst [vmem:[#allocation2 + $0x40] sm:$0xff] %v242
  %259 = vst [vmem:[#allocation2 + $0x48] sm:$0xff] %v243
  %260 = vst [vmem:[#allocation2 + $0x50] sm:$0xff] %v244
  %261 = vst [vmem:[#allocation2 + $0x58] sm:$0xff] %v245
  %262 = vst [vmem:[#allocation2 + $0x60] sm:$0xff] %v246
  %263 = vst [vmem:[#allocation2 + $0x68] sm:$0xff] %v247
  %264 = vst [vmem:[#allocation2 + $0x70] sm:$0xff] %v248
  %265 = vst [vmem:[#allocation2 + $0x78] sm:$0xff] %v249
  // Predicated region
  $region18: #{pspnet_forward.4} parent=0 // pred_check
    %p266 = pneg %p15
  $region19: #{pspnet_forward.4} parent=0 // pred_check_branch
    %268 = sbr.rel (%p266) target = $region21
  $region20: #{pspnet_forward.4} parent=0 // pred_region
    %v269 = vld [vmem:[#allocation2] sm:$0xff]
    %v270 = vld [vmem:[#allocation2 + $0x8] sm:$0xff]
    %v271 = vld [vmem:[#allocation2 + $0x10] sm:$0xff]
    %v272 = vld [vmem:[#allocation2 + $0x18] sm:$0xff]
    %v273 = vld [vmem:[#allocation2 + $0x20] sm:$0xff]
    %v274 = vld [vmem:[#allocation2 + $0x28] sm:$0xff]
    %v275 = vld [vmem:[#allocation2 + $0x30] sm:$0xff]
    %v276 = vld [vmem:[#allocation2 + $0x38] sm:$0xff]
    %v277 = vld [vmem:[#allocation2 + $0x40] sm:$0xff]
    %v278 = vld [vmem:[#allocation2 + $0x48] sm:$0xff]
    %v279 = vld [vmem:[#allocation2 + $0x50] sm:$0xff]
    %v280 = vld [vmem:[#allocation2 + $0x58] sm:$0xff]
    %v281 = vld [vmem:[#allocation2 + $0x60] sm:$0xff]
    %v282 = vld [vmem:[#allocation2 + $0x68] sm:$0xff]
    %v283 = vld [vmem:[#allocation2 + $0x70] sm:$0xff]
    %v284 = vld [vmem:[#allocation2 + $0x78] sm:$0xff]
    %v285 = vld [vmem:[%s2] sm:$0x1]
    %v287 = vlaneseq
    %v288 = vshrl.u32 %v287, 7
    %v289 = vsub.s32 0, %v288
    %v290 = vrot.slane %v285, %v289
    %v292 = vadd.f32 %v269, %v290
    %v293 = vadd.f32 %v270, %v290
    %v294 = vadd.f32 %v271, %v290
    %v295 = vadd.f32 %v272, %v290
    %v296 = vadd.f32 %v273, %v290
    %v297 = vadd.f32 %v274, %v290
    %v298 = vadd.f32 %v275, %v290
    %v299 = vadd.f32 %v276, %v290
    %v300 = vadd.f32 %v277, %v290
    %v301 = vadd.f32 %v278, %v290
    %v302 = vadd.f32 %v279, %v290
    %v303 = vadd.f32 %v280, %v290
    %v304 = vadd.f32 %v281, %v290
    %v305 = vadd.f32 %v282, %v290
    %v306 = vadd.f32 %v283, %v290
    %v307 = vadd.f32 %v284, %v290
    %v308 = vmax.f32 %v292, 0.0
    %v309 = vmax.f32 %v293, 0.0
    %v310 = vmax.f32 %v294, 0.0
    %v311 = vmax.f32 %v295, 0.0
    %v312 = vmax.f32 %v296, 0.0
    %v313 = vmax.f32 %v297, 0.0
    %v314 = vmax.f32 %v298, 0.0
    %v315 = vmax.f32 %v299, 0.0
    %v316 = vmax.f32 %v300, 0.0
    %v317 = vmax.f32 %v301, 0.0
    %v318 = vmax.f32 %v302, 0.0
    %v319 = vmax.f32 %v303, 0.0
    %v320 = vmax.f32 %v304, 0.0
    %v321 = vmax.f32 %v305, 0.0
    %v322 = vmax.f32 %v306, 0.0
    %v323 = vmax.f32 %v307, 0.0
    %324 = vst [vmem:[%s3] sm:$0xff] %v308
    %325 = vst [vmem:[%s3 + $0x8] sm:$0xff] %v309
    %326 = vst [vmem:[%s3 + $0x10] sm:$0xff] %v310
    %327 = vst [vmem:[%s3 + $0x18] sm:$0xff] %v311
    %328 = vst [vmem:[%s3 + $0x20] sm:$0xff] %v312
    %329 = vst [vmem:[%s3 + $0x28] sm:$0xff] %v313
    %330 = vst [vmem:[%s3 + $0x30] sm:$0xff] %v314
    %331 = vst [vmem:[%s3 + $0x38] sm:$0xff] %v315
    %332 = vst [vmem:[%s3 + $0x40] sm:$0xff] %v316
    %333 = vst [vmem:[%s3 + $0x48] sm:$0xff] %v317
    %334 = vst [vmem:[%s3 + $0x50] sm:$0xff] %v318
    %335 = vst [vmem:[%s3 + $0x58] sm:$0xff] %v319
    %336 = vst [vmem:[%s3 + $0x60] sm:$0xff] %v320
    %337 = vst [vmem:[%s3 + $0x68] sm:$0xff] %v321
    %338 = vst [vmem:[%s3 + $0x70] sm:$0xff] %v322
    %339 = vst [vmem:[%s3 + $0x78] sm:$0xff] %v323
  $region21: #{pspnet_forward.4} parent=0 // pred_fallthru
    _
  // Predicated region
  $region22: #{pspnet_forward.4} parent=0 // pred_check
    _
  $region23: #{pspnet_forward.4} parent=0 // pred_check_branch
    %341 = sbr.rel (0) target = $region25
  $region24: #{pspnet_forward.4} parent=0 // pred_region
    _
  $region25: #{pspnet_forward.4} parent=0 // pred_fallthru
    _
  // Predicated region
  $region26: #{pspnet_forward.4} parent=0 // pred_check
    _
  $region27: #{pspnet_forward.4} parent=0 // pred_check_branch
    %343 = sbr.rel (0) target = $region29
  $region28: #{pspnet_forward.4} parent=0 // pred_region
    _
  $region29: #{pspnet_forward.4} parent=0 // pred_fallthru
    _

// kernel: pspnet_forward.5
$region0: #{pspnet_forward.5}
  #allocation0 [shape = 'u32[]', space=smem, size = 0x4, offset = 0x4, fixed_abs, tag = 'smem constant byte address 0x4 - core index']
  #allocation1 [shape = 'u32[144,128]{1,0:T(1,128)}', space=vmem, size = 0x12000, scoped, tag = 'internal scratch']
  #allocation2 [shape = 'f32[104,128]{1,0:T(8,128)}', space=vmem, size = 0xd000, scoped, tag = 'scratch operand']
  %s0 = inlined_call_operand.vmem [shape: bf16[100,32], index: 0, kind: input, shape index: {}]
  %s1 = inlined_call_operand.vmem [shape: bf16[32,32], index: 1, kind: input, shape index: {}]
  %s2 = inlined_call_operand.vmem [shape: f32[1,32], index: 2, kind: input, shape index: {}]
  %s3 = inlined_call_operand.vmem [shape: f32[100,32], index: 3, kind: output, shape index: {}]
  %s4 = sld [smem:[#allocation0]]
  $region30: #{pspnet_forward.5} parent=0
    _
  %s6 = ssub.s32 1, %s4
  %s7 = scalar_select 0, %s6, %s4
  // Predicated region
  $region2: #{pspnet_forward.5} parent=0 // pred_check
    _
  $region3: #{pspnet_forward.5} parent=0 // pred_check_branch
    %9 = sbr.rel (0) target = $region5
  $region4: #{pspnet_forward.5} parent=0 // pred_region
    _
  $region5: #{pspnet_forward.5} parent=0 // pred_fallthru
    _
  // Predicated region
  $region6: #{pspnet_forward.5} parent=0 // pred_check
    _
  $region7: #{pspnet_forward.5} parent=0 // pred_check_branch
    %11 = sbr.rel (0) target = $region9
  $region8: #{pspnet_forward.5} parent=0 // pred_region
    _
  $region9: #{pspnet_forward.5} parent=0 // pred_fallthru
    _
  // Predicated region
  $region10: #{pspnet_forward.5} parent=0 // pred_check
    _
  $region11: #{pspnet_forward.5} parent=0 // pred_check_branch
    %13 = sbr.rel (0) target = $region13
  $region12: #{pspnet_forward.5} parent=0 // pred_region
    _
  $region13: #{pspnet_forward.5} parent=0 // pred_fallthru
    _
  %p15 = scmp.eq.s32.totalorder 0, 0
  // Predicated region
  $region14: #{pspnet_forward.5} parent=0 // pred_check
    %p16 = pneg %p15
  $region15: #{pspnet_forward.5} parent=0 // pred_check_branch
    %18 = sbr.rel (%p16) target = $region17
  $region16: #{pspnet_forward.5} parent=0 // pred_region
    %19 = vst [vmem:[#allocation2] sm:$0xff] 0.0
    %20 = vst [vmem:[#allocation2 + $0x8] sm:$0xff] 0.0
    %21 = vst [vmem:[#allocation2 + $0x10] sm:$0xff] 0.0
    %22 = vst [vmem:[#allocation2 + $0x18] sm:$0xff] 0.0
    %23 = vst [vmem:[#allocation2 + $0x20] sm:$0xff] 0.0
    %24 = vst [vmem:[#allocation2 + $0x28] sm:$0xff] 0.0
    %25 = vst [vmem:[#allocation2 + $0x30] sm:$0xff] 0.0
    %26 = vst [vmem:[#allocation2 + $0x38] sm:$0xff] 0.0
    %27 = vst [vmem:[#allocation2 + $0x40] sm:$0xff] 0.0
    %28 = vst [vmem:[#allocation2 + $0x48] sm:$0xff] 0.0
    %29 = vst [vmem:[#allocation2 + $0x50] sm:$0xff] 0.0
    %30 = vst [vmem:[#allocation2 + $0x58] sm:$0xff] 0.0
    %31 = vst [vmem:[#allocation2 + $0x60] sm:$0xff] 0.0
  $region17: #{pspnet_forward.5} parent=0 // pred_fallthru
    _
  %v32 = vld [vmem:[#allocation2] sm:$0xff]
  %v33 = vld [vmem:[#allocation2 + $0x8] sm:$0xff]
  %v34 = vld [vmem:[#allocation2 + $0x10] sm:$0xff]
  %v35 = vld [vmem:[#allocation2 + $0x18] sm:$0xff]
  %v36 = vld [vmem:[#allocation2 + $0x20] sm:$0xff]
  %v37 = vld [vmem:[#allocation2 + $0x28] sm:$0xff]
  %v38 = vld [vmem:[#allocation2 + $0x30] sm:$0xff]
  %v39 = vld [vmem:[#allocation2 + $0x38] sm:$0xff]
  %v40 = vld [vmem:[#allocation2 + $0x40] sm:$0xff]
  %v41 = vld [vmem:[#allocation2 + $0x48] sm:$0xff]
  %v42 = vld [vmem:[#allocation2 + $0x50] sm:$0xff]
  %v43 = vld [vmem:[#allocation2 + $0x58] sm:$0xff]
  %v44 = vld [vmem:[#allocation2 + $0x60] sm:$0xff]
  %v45 = vld [vmem:[%s0] sm:$0xf]
  %v46 = vld [vmem:[%s0 + $0x4] sm:$0xf]
  %v47 = vld [vmem:[%s0 + $0x8] sm:$0xf]
  %v48 = vld [vmem:[%s0 + $0xc] sm:$0xf]
  %v49 = vld [vmem:[%s0 + $0x10] sm:$0xf]
  %v50 = vld [vmem:[%s0 + $0x14] sm:$0xf]
  %v51 = vld [vmem:[%s0 + $0x18] sm:$0xf]
  %v52 = vld [vmem:[%s0 + $0x1c] sm:$0xf]
  %v53 = vld [vmem:[%s0 + $0x20] sm:$0xf]
  %v54 = vld [vmem:[%s0 + $0x24] sm:$0xf]
  %v55 = vld [vmem:[%s0 + $0x28] sm:$0xf]
  %v56 = vld [vmem:[%s0 + $0x2c] sm:$0xf]
  %v57 = vld [vmem:[%s0 + $0x30] sm:$0xf]
  %v58 = vld [vmem:[%s1] sm:$0xf]
  %v59 = vld [vmem:[%s1 + $0x4] sm:$0xf]
  %v60 = vld [vmem:[%s1 + $0x8] sm:$0xf]
  %v61 = vld [vmem:[%s1 + $0xc] sm:$0xf]
  %v75 = vunpack.c.l.b16 %v45
  %v76 = vunpack.c.l.b16 %v46
  %v77 = vunpack.c.l.b16 %v47
  %v78 = vunpack.c.l.b16 %v48
  %v79 = vunpack.c.l.b16 %v49
  %v80 = vunpack.c.l.b16 %v50
  %v81 = vunpack.c.l.b16 %v51
  %v82 = vunpack.c.l.b16 %v52
  %v83 = vunpack.c.l.b16 %v53
  %v84 = vunpack.c.l.b16 %v54
  %v85 = vunpack.c.l.b16 %v55
  %v86 = vunpack.c.l.b16 %v56
  %v87 = vunpack.c.l.b16 %v57
  %v88 = vpack.c.b16 %v76, %v75
  %v89 = vpack.c.b16 %v78, %v77
  %v90 = vpack.c.b16 %v80, %v79
  %v91 = vpack.c.b16 %v82, %v81
  %v92 = vpack.c.b16 %v84, %v83
  %v93 = vpack.c.b16 %v86, %v85
  %v94 = vpack.c.b16 %v87, %v87
  %v99 = vunpack.c.l.b16 %v58
  %v100 = vunpack.c.l.b16 %v59
  %v101 = vunpack.c.l.b16 %v60
  %v102 = vunpack.c.l.b16 %v61
  %v103 = vpack.c.b16 %v100, %v99
  %v104 = vpack.c.b16 %v102, %v101
  %vm107 = vcmask 261120
  %v109 = vsel %vm107, %v88, 0
  %v112 = vsel %vm107, %v89, 0
  %v115 = vsel %vm107, %v90, 0
  %v118 = vsel %vm107, %v91, 0
  %v121 = vsel %vm107, %v92, 0
  %v124 = vsel %vm107, %v93, 0
  %v127 = vsel %vm107, %v94, 0
  %129 = vmatprep.subr.bf16.mxu0 0
  %130 = vmatpush1.bf16.msra.mxu0 %v103
  %131 = vmatprep.subr.bf16.mxu0 0
  %132 = vmatpush1.bf16.msra.mxu0 %v104
  %133 = vmatprep.subr.bf16.mxu0 0
  %134 = vmatpush1.bf16.msra.mxu0 0
  %135 = vmatprep.subr.bf16.mxu0 0
  %136 = vmatpush1.bf16.msra.mxu0 0
  %137 = vmatprep.subr.bf16.mxu0 0
  %138 = vmatpush1.bf16.msra.mxu0 0
  %139 = vmatprep.subr.bf16.mxu0 0
  %140 = vmatpush1.bf16.msra.mxu0 0
  %141 = vmatprep.subr.bf16.mxu0 0
  %142 = vmatpush1.bf16.msra.mxu0 0
  %143 = vmatprep.subr.bf16.mxu0 0
  %144 = vmatpush1.bf16.msra.mxu0 0
  %145 = vmatprep.subr.bf16.mxu0 0
  %146 = vmatpush1.bf16.msra.mxu0 0
  %147 = vmatprep.subr.bf16.mxu0 0
  %148 = vmatpush1.bf16.msra.mxu0 0
  %149 = vmatprep.subr.bf16.mxu0 0
  %150 = vmatpush1.bf16.msra.mxu0 0
  %151 = vmatprep.subr.bf16.mxu0 0
  %152 = vmatpush1.bf16.msra.mxu0 0
  %153 = vmatprep.subr.bf16.mxu0 0
  %154 = vmatpush1.bf16.msra.mxu0 0
  %155 = vmatprep.subr.bf16.mxu0 0
  %156 = vmatpush1.bf16.msra.mxu0 0
  %157 = vmatprep.subr.bf16.mxu0 0
  %158 = vmatpush1.bf16.msra.mxu0 0
  %159 = vmatprep.subr.bf16.mxu0 0
  %160 = vmatpush1.bf16.msra.mxu0 0
  %161 = vmatprep.mubr.bf16.mxu0 0
  %162 = vmatmul.mubr.bf16.gmra.mrb[0].mxu0 %v109
  %v163 = vpop.f32.mrb[0].mxu0
  %v164 = vadd.f32 0.0, %v163
  %v165 = vpop.f32.mrb[0].mxu0
  %v166 = vpop.f32.mrb[0].mxu0
  %v167 = vadd.f32 0.0, %v166
  %v168 = vpop.f32.mrb[0].mxu0
  %169 = vmatprep.mubr.bf16.mxu0 0
  %170 = vmatmul.mubr.bf16.gmra.mrb[0].mxu0 %v112
  %v171 = vpop.f32.mrb[0].mxu0
  %v172 = vadd.f32 0.0, %v171
  %v173 = vpop.f32.mrb[0].mxu0
  %v174 = vpop.f32.mrb[0].mxu0
  %v175 = vadd.f32 0.0, %v174
  %v176 = vpop.f32.mrb[0].mxu0
  %177 = vmatprep.mubr.bf16.mxu0 0
  %178 = vmatmul.mubr.bf16.gmra.mrb[0].mxu0 %v115
  %v179 = vpop.f32.mrb[0].mxu0
  %v180 = vadd.f32 0.0, %v179
  %v181 = vpop.f32.mrb[0].mxu0
  %v182 = vpop.f32.mrb[0].mxu0
  %v183 = vadd.f32 0.0, %v182
  %v184 = vpop.f32.mrb[0].mxu0
  %185 = vmatprep.mubr.bf16.mxu0 0
  %186 = vmatmul.mubr.bf16.gmra.mrb[0].mxu0 %v118
  %v187 = vpop.f32.mrb[0].mxu0
  %v188 = vadd.f32 0.0, %v187
  %v189 = vpop.f32.mrb[0].mxu0
  %v190 = vpop.f32.mrb[0].mxu0
  %v191 = vadd.f32 0.0, %v190
  %v192 = vpop.f32.mrb[0].mxu0
  %193 = vmatprep.mubr.bf16.mxu0 0
  %194 = vmatmul.mubr.bf16.gmra.mrb[0].mxu0 %v121
  %v195 = vpop.f32.mrb[0].mxu0
  %v196 = vadd.f32 0.0, %v195
  %v197 = vpop.f32.mrb[0].mxu0
  %v198 = vpop.f32.mrb[0].mxu0
  %v199 = vadd.f32 0.0, %v198
  %v200 = vpop.f32.mrb[0].mxu0
  %201 = vmatprep.mubr.bf16.mxu0 0
  %202 = vmatmul.mubr.bf16.gmra.mrb[0].mxu0 %v124
  %v203 = vpop.f32.mrb[0].mxu0
  %v204 = vadd.f32 0.0, %v203
  %v205 = vpop.f32.mrb[0].mxu0
  %v206 = vpop.f32.mrb[0].mxu0
  %v207 = vadd.f32 0.0, %v206
  %v208 = vpop.f32.mrb[0].mxu0
  %209 = vmatprep.mubr.bf16.mxu0 0
  %210 = vmatmul.mubr.bf16.gmra.mrb[0].mxu0 %v127
  %v211 = vpop.f32.mrb[0].mxu0
  %v212 = vadd.f32 0.0, %v211
  %v213 = vpop.f32.mrb[0].mxu0
  %v214 = vpop.f32.mrb[0].mxu0
  %v215 = vpop.f32.mrb[0].mxu0
  %216 = vdwg.mxu0
  %v217 = vadd.f32 %v32, %v164
  %v218 = vadd.f32 %v33, %v167
  %v219 = vadd.f32 %v34, %v172
  %v220 = vadd.f32 %v35, %v175
  %v221 = vadd.f32 %v36, %v180
  %v222 = vadd.f32 %v37, %v183
  %v223 = vadd.f32 %v38, %v188
  %v224 = vadd.f32 %v39, %v191
  %v225 = vadd.f32 %v40, %v196
  %v226 = vadd.f32 %v41, %v199
  %v227 = vadd.f32 %v42, %v204
  %v228 = vadd.f32 %v43, %v207
  %v229 = vadd.f32 %v44, %v212
  %230 = vst [vmem:[#allocation2] sm:$0xff] %v217
  %231 = vst [vmem:[#allocation2 + $0x8] sm:$0xff] %v218
  %232 = vst [vmem:[#allocation2 + $0x10] sm:$0xff] %v219
  %233 = vst [vmem:[#allocation2 + $0x18] sm:$0xff] %v220
  %234 = vst [vmem:[#allocation2 + $0x20] sm:$0xff] %v221
  %235 = vst [vmem:[#allocation2 + $0x28] sm:$0xff] %v222
  %236 = vst [vmem:[#allocation2 + $0x30] sm:$0xff] %v223
  %237 = vst [vmem:[#allocation2 + $0x38] sm:$0xff] %v224
  %238 = vst [vmem:[#allocation2 + $0x40] sm:$0xff] %v225
  %239 = vst [vmem:[#allocation2 + $0x48] sm:$0xff] %v226
  %240 = vst [vmem:[#allocation2 + $0x50] sm:$0xff] %v227
  %241 = vst [vmem:[#allocation2 + $0x58] sm:$0xff] %v228
  %242 = vst [vmem:[#allocation2 + $0x60] sm:$0xff] %v229
  // Predicated region
  $region18: #{pspnet_forward.5} parent=0 // pred_check
    %p243 = pneg %p15
  $region19: #{pspnet_forward.5} parent=0 // pred_check_branch
    %245 = sbr.rel (%p243) target = $region21
  $region20: #{pspnet_forward.5} parent=0 // pred_region
    %v246 = vld [vmem:[#allocation2] sm:$0xff]
    %v247 = vld [vmem:[#allocation2 + $0x8] sm:$0xff]
    %v248 = vld [vmem:[#allocation2 + $0x10] sm:$0xff]
    %v249 = vld [vmem:[#allocation2 + $0x18] sm:$0xff]
    %v250 = vld [vmem:[#allocation2 + $0x20] sm:$0xff]
    %v251 = vld [vmem:[#allocation2 + $0x28] sm:$0xff]
    %v252 = vld [vmem:[#allocation2 + $0x30] sm:$0xff]
    %v253 = vld [vmem:[#allocation2 + $0x38] sm:$0xff]
    %v254 = vld [vmem:[#allocation2 + $0x40] sm:$0xff]
    %v255 = vld [vmem:[#allocation2 + $0x48] sm:$0xff]
    %v256 = vld [vmem:[#allocation2 + $0x50] sm:$0xff]
    %v257 = vld [vmem:[#allocation2 + $0x58] sm:$0xff]
    %v258 = vld [vmem:[#allocation2 + $0x60] sm:$0xff]
    %v259 = vld [vmem:[%s2] sm:$0x1]
    %v261 = vlaneseq
    %v262 = vshrl.u32 %v261, 7
    %v263 = vsub.s32 0, %v262
    %v264 = vrot.slane %v259, %v263
    %v266 = vadd.f32 %v246, %v264
    %v267 = vadd.f32 %v247, %v264
    %v268 = vadd.f32 %v248, %v264
    %v269 = vadd.f32 %v249, %v264
    %v270 = vadd.f32 %v250, %v264
    %v271 = vadd.f32 %v251, %v264
    %v272 = vadd.f32 %v252, %v264
    %v273 = vadd.f32 %v253, %v264
    %v274 = vadd.f32 %v254, %v264
    %v275 = vadd.f32 %v255, %v264
    %v276 = vadd.f32 %v256, %v264
    %v277 = vadd.f32 %v257, %v264
    %v278 = vadd.f32 %v258, %v264
    %v279 = vmax.f32 %v266, 0.0
    %v280 = vmax.f32 %v267, 0.0
    %v281 = vmax.f32 %v268, 0.0
    %v282 = vmax.f32 %v269, 0.0
    %v283 = vmax.f32 %v270, 0.0
    %v284 = vmax.f32 %v271, 0.0
    %v285 = vmax.f32 %v272, 0.0
    %v286 = vmax.f32 %v273, 0.0
    %v287 = vmax.f32 %v274, 0.0
    %v288 = vmax.f32 %v275, 0.0
    %v289 = vmax.f32 %v276, 0.0
    %v290 = vmax.f32 %v277, 0.0
    %v291 = vmax.f32 %v278, 0.0
    %292 = vst [vmem:[%s3] sm:$0xff] %v279
    %293 = vst [vmem:[%s3 + $0x8] sm:$0xff] %v280
    %294 = vst [vmem:[%s3 + $0x10] sm:$0xff] %v281
    %295 = vst [vmem:[%s3 + $0x18] sm:$0xff] %v282
    %296 = vst [vmem:[%s3 + $0x20] sm:$0xff] %v283
    %297 = vst [vmem:[%s3 + $0x28] sm:$0xff] %v284
    %298 = vst [vmem:[%s3 + $0x30] sm:$0xff] %v285
    %299 = vst [vmem:[%s3 + $0x38] sm:$0xff] %v286
    %300 = vst [vmem:[%s3 + $0x40] sm:$0xff] %v287
    %301 = vst [vmem:[%s3 + $0x48] sm:$0xff] %v288
    %302 = vst [vmem:[%s3 + $0x50] sm:$0xff] %v289
    %303 = vst [vmem:[%s3 + $0x58] sm:$0xff] %v290
    %304 = vst [vmem:[%s3 + $0x60] sm:$0xff] %v291
  $region21: #{pspnet_forward.5} parent=0 // pred_fallthru
    _
  // Predicated region
  $region22: #{pspnet_forward.5} parent=0 // pred_check
    _
  $region23: #{pspnet_forward.5} parent=0 // pred_check_branch
    %306 = sbr.rel (0) target = $region25
  $region24: #{pspnet_forward.5} parent=0 // pred_region
    _
  $region25: #{pspnet_forward.5} parent=0 // pred_fallthru
    _
  // Predicated region
  $region26: #{pspnet_forward.5} parent=0 // pred_check
    _
  $region27: #{pspnet_forward.5} parent=0 // pred_check_branch
    %308 = sbr.rel (0) target = $region29
  $region28: #{pspnet_forward.5} parent=0 // pred_region
    _
  $region29: #{pspnet_forward.5} parent=0 // pred_fallthru
    _

// kernel: pspnet_forward.6
$region0: #{pspnet_forward.6}
  #allocation0 [shape = 'u32[]', space=smem, size = 0x4, offset = 0x4, fixed_abs, tag = 'smem constant byte address 0x4 - core index']
  #allocation1 [shape = 'u32[144,128]{1,0:T(1,128)}', space=vmem, size = 0x12000, scoped, tag = 'internal scratch']
  #allocation2 [shape = 'f32[16,64]{1,0:T(8,128)}', space=vmem, size = 0x2000, scoped, tag = 'scratch operand']
  %s0 = inlined_call_operand.vmem [shape: bf16[2,18,18,64], index: 0, kind: input, shape index: {}]
  %s1 = inlined_call_operand.vmem [shape: bf16[9,64,64], index: 1, kind: input, shape index: {}]
  %s2 = inlined_call_operand.vmem [shape: f32[1,64], index: 2, kind: input, shape index: {}]
  %s3 = inlined_call_operand.vmem [shape: f32[2,16,16,64], index: 3, kind: output, shape index: {}]
  %s4 = sld [smem:[#allocation0]]
  $region53: #{pspnet_forward.6} parent=0
    _
  %s6 = ssub.s32 1, %s4
  %s7 = scalar_select 0, %s6, %s4
  loop: start=0, step=1, limit=98
  $region2: #{pspnet_forward.6} parent=0 // loop_pre_header
    _
  $region3: #{pspnet_forward.6} parent=0 // loop_header
    %s9 = sphi 0, %s13
    %p10 = scmp.ge.s32.totalorder %s9, 98
    %s16 = sphi 0, %s35
    %s17 = sphi 0, %s31
    %s18 = sphi 0, %s27
    %s19 = sphi 0, %s16
    %s20 = sphi 0, %s17
    %s21 = sphi 0, %s18
    %s22 = sphi 0, %s19
    %s23 = sphi 0, %s20
    %s24 = sphi 0, %s21
    %s42 = sphi 0, %s44
    %s45 = sphi 0, %s42
    %s46 = sphi 0, %s45
    %s62 = sphi 0, %s46
    %s66 = sphi 0, %s66
    %s68 = sphi 0, %s66
    %s69 = sphi 0, %s68
    %s83 = sphi 0, %s69
    %s87 = sphi 0, %s87
    %s89 = sphi 0, %s87
    %s90 = sphi 0, %s89
    %s104 = sphi 0, %s90
    %s112 = sphi 0, %s114
    %s115 = sphi 0, %s112
    %s116 = sphi 0, %s115
    %s132 = sphi 0, %s116
  $region4: #{pspnet_forward.6} parent=0 // loop_header_branch
    %12 = sbr.rel (%p10) target = $region8
  $region5: #{pspnet_forward.6} parent=0 // loop_body
    %s14 = ssub.s32 %s9, 1
    %s15 = ssub.s32 %s9, 2
    %s25 = sadd.s32 1, %s18
    %p26 = scmp.ge.s32.totalorder %s25, 3
    %s27 = scalar_select %p26, 0, %s25
    %s28 = sadd.s32 1, %s17
    %s29 = scalar_select %p26, %s28, %s17
    %p30 = scmp.ge.s32.totalorder %s29, 16
    %s31 = scalar_select %p30, 0, %s29
    %s32 = sadd.s32 1, %s16
    %s33 = scalar_select %p30, %s32, %s16
    %p34 = scmp.ge.s32.totalorder %s33, 2
    %s35 = scalar_select %p34, 0, %s33
    %s36 = sadd.s32 %s17, %s18
    %s37 = sadd.s32 %s31, %s27
    %s38 = ssub.s32 %s16, %s35
    %s39 = ssub.s32 %s36, %s37
    %s40 = sor.u32 %s38, %s39
    %p41 = scmp.eq.s32.totalorder %s40, 0
    %s43 = sadd.s32 %s42, 1
    %s44 = scalar_select %p41, %s42, %s43
    %p47 = pneg %p41
    %p48 = scmp.eq.s32.totalorder %s9, 95
    %p49 = por %p47, %p48
    %p50 = scmp.ne.s32.totalorder %s42, %s45
    %p51 = scmp.eq.s32.totalorder %s9, 0
    %p52 = por %p50, %p51
    %p53 = scmp.ne.s32.totalorder %s42, %s45
    %p54 = scmp.eq.s32.totalorder %s14, 95
    %p55 = por %p53, %p54
    %p56 = scmp.ne.s32.totalorder %s45, %s46
    %p57 = scmp.eq.s32.totalorder %s14, 0
    %p58 = por %p56, %p57
    %p59 = scmp.ne.s32.totalorder %s45, %s46
    %p60 = scmp.eq.s32.totalorder %s15, 95
    %p61 = por %p59, %p60
    %p63 = scmp.ne.s32.totalorder %s46, %s62
    %p64 = scmp.eq.s32.totalorder %s15, 0
    %p65 = por %p63, %p64
    %s67 = sadd.s32 %s66, 1
    %p70 = scmp.eq.s32.totalorder %s9, 95
    %p71 = scmp.ne.s32.totalorder %s66, %s68
    %p72 = scmp.eq.s32.totalorder %s9, 0
    %p73 = por %p71, %p72
    %p74 = scmp.ne.s32.totalorder %s66, %s68
    %p75 = scmp.eq.s32.totalorder %s14, 95
    %p76 = por %p74, %p75
    %p77 = scmp.ne.s32.totalorder %s68, %s69
    %p78 = scmp.eq.s32.totalorder %s14, 0
    %p79 = por %p77, %p78
    %p80 = scmp.ne.s32.totalorder %s68, %s69
    %p81 = scmp.eq.s32.totalorder %s15, 95
    %p82 = por %p80, %p81
    %p84 = scmp.ne.s32.totalorder %s69, %s83
    %p85 = scmp.eq.s32.totalorder %s15, 0
    %p86 = por %p84, %p85
    %s88 = sadd.s32 %s87, 1
    %p91 = scmp.eq.s32.totalorder %s9, 95
    %p92 = scmp.ne.s32.totalorder %s87, %s89
    %p93 = scmp.eq.s32.totalorder %s9, 0
    %p94 = por %p92, %p93
    %p95 = scmp.ne.s32.totalorder %s87, %s89
    %p96 = scmp.eq.s32.totalorder %s14, 95
    %p97 = por %p95, %p96
    %p98 = scmp.ne.s32.totalorder %s89, %s90
    %p99 = scmp.eq.s32.totalorder %s14, 0
    %p100 = por %p98, %p99
    %p101 = scmp.ne.s32.totalorder %s89, %s90
    %p102 = scmp.eq.s32.totalorder %s15, 95
    %p103 = por %p101, %p102
    %p105 = scmp.ne.s32.totalorder %s90, %s104
    %p106 = scmp.eq.s32.totalorder %s15, 0
    %p107 = por %p105, %p106
    %s108 = ssub.s32 %s16, %s35
    %s109 = ssub.s32 %s17, %s31
    %s110 = sor.u32 %s108, %s109
    %p111 = scmp.eq.s32.totalorder %s110, 0
    %s113 = sadd.s32 %s112, 1
    %s114 = scalar_select %p111, %s112, %s113
    %p117 = pneg %p111
    %p118 = scmp.eq.s32.totalorder %s9, 95
    %p119 = por %p117, %p118
    %p120 = scmp.ne.s32.totalorder %s112, %s115
    %p121 = scmp.eq.s32.totalorder %s9, 0
    %p122 = por %p120, %p121
    %p123 = scmp.ne.s32.totalorder %s112, %s115
    %p124 = scmp.eq.s32.totalorder %s14, 95
    %p125 = por %p123, %p124
    %p126 = scmp.ne.s32.totalorder %s115, %s116
    %p127 = scmp.eq.s32.totalorder %s14, 0
    %p128 = por %p126, %p127
    %p129 = scmp.ne.s32.totalorder %s115, %s116
    %p130 = scmp.eq.s32.totalorder %s15, 95
    %p131 = por %p129, %p130
    %p133 = scmp.ne.s32.totalorder %s116, %s132
    %p134 = scmp.eq.s32.totalorder %s15, 0
    %p135 = por %p133, %p134
    %p136 = scmp.le.s32.totalorder 1, %s9
    %p137 = scmp.lt.s32.totalorder %s9, 97
    %p138 = pnand %p136, %p137
    %p139 = pneg %p138
    // Predicated region
    $region9: #{pspnet_forward.6} parent=5 // pred_check
      _
    $region10: #{pspnet_forward.6} parent=5 // pred_check_branch
      %141 = sbr.rel (%p138) target = $region12
    $region11: #{pspnet_forward.6} parent=5 // pred_region
      %s142 = ssub.s32 %s9, 1
      // Predicated region
      $region13: #{pspnet_forward.6} parent=11 // pred_check
        %p143 = pneg %p79
      $region14: #{pspnet_forward.6} parent=11 // pred_check_branch
        %145 = sbr.rel (%p143) target = $region16
      $region15: #{pspnet_forward.6} parent=11 // pred_region
        _
      $region16: #{pspnet_forward.6} parent=11 // pred_fallthru
        _
      // Predicated region
      $region17: #{pspnet_forward.6} parent=11 // pred_check
        %p146 = pneg %p100
      $region18: #{pspnet_forward.6} parent=11 // pred_check_branch
        %148 = sbr.rel (%p146) target = $region20
      $region19: #{pspnet_forward.6} parent=11 // pred_region
        _
      $region20: #{pspnet_forward.6} parent=11 // pred_fallthru
        _
    $region12: #{pspnet_forward.6} parent=5 // pred_fallthru
      _
    %p149 = scmp.lt.s32.totalorder %s9, 96
    // Predicated region
    $region21: #{pspnet_forward.6} parent=5 // pred_check
      %p150 = pneg %p149
    $region22: #{pspnet_forward.6} parent=5 // pred_check_branch
      %152 = sbr.rel (%p150) target = $region24
    $region23: #{pspnet_forward.6} parent=5 // pred_region
      // Predicated region
      $region25: #{pspnet_forward.6} parent=23 // pred_check
        %p153 = pneg %p52
      $region26: #{pspnet_forward.6} parent=23 // pred_check_branch
        %155 = sbr.rel (%p153) target = $region28
      $region27: #{pspnet_forward.6} parent=23 // pred_region
        %s156 = sadd.s32 %s17, %s18
        %p157 = scmp.lt.s32.totalorder %s16, 1
        %s158 = scalar_select %p157, %s16, 1
        %p159 = scmp.lt.s32.totalorder %s156, 17
        %s160 = scalar_select %p159, %s156, 17
        %s161 = smul.addr %s160, 3
        %s162 = smul.addr %s158, 54
        %s163 = sadd.s32 %s161, %s162
        %s164 = smul.addr %s163, 4
        %s165 = scalar_lea.vmem %s0, %s164
        %s166 = sadd.s32 %s17, %s18
      $region28: #{pspnet_forward.6} parent=23 // pred_fallthru
        _
    $region24: #{pspnet_forward.6} parent=5 // pred_fallthru
      _
    %p167 = scmp.le.s32.totalorder 1, %s9
    %p168 = scmp.lt.s32.totalorder %s9, 97
    %p169 = pnand %p167, %p168
    %p170 = pneg %p169
    // Predicated region
    $region29: #{pspnet_forward.6} parent=5 // pred_check
      _
    $region30: #{pspnet_forward.6} parent=5 // pred_check_branch
      %172 = sbr.rel (%p169) target = $region32
    $region31: #{pspnet_forward.6} parent=5 // pred_region
      %s173 = ssub.s32 %s9, 1
      %s174 = sadd.s32 %s20, %s21
      %p175 = scmp.lt.s32.totalorder %s19, 1
      %s176 = scalar_select %p175, %s19, 1
      %p177 = scmp.lt.s32.totalorder %s174, 17
      %s178 = scalar_select %p177, %s174, 17
      %s179 = smul.addr %s178, 3
      %s180 = smul.addr %s176, 54
      %s181 = sadd.s32 %s179, %s180
      %s182 = smul.addr %s181, 4
      %s183 = scalar_lea.vmem %s0, %s182
      %p184 = pneg %p58
      %p185 = pneg %p55
      %p186 = pneg %p79
      %p187 = pneg %p76
      %p188 = pneg %p100
      %p189 = pneg %p97
      %p190 = pneg %p128
      %p191 = pneg %p125
      %p192 = scmp.lt.s32.totalorder %s19, 1
      %s193 = scalar_select %p192, %s19, 1
      %p194 = scmp.lt.s32.totalorder %s20, 15
      %s195 = scalar_select %p194, %s20, 15
      %s196 = smul.addr %s195, 2
      %s197 = smul.addr %s193, 32
      %s198 = sadd.s32 %s196, %s197
      %s199 = smul.addr %s198, 8
      %s200 = scalar_lea.vmem %s3, %s199
      %s201 = sadd.s32 %s20, %s21
      %p202 = scmp.lt.s32.totalorder %s19, 1
      %s203 = scalar_select %p202, %s19, 1
      %p204 = scmp.lt.s32.totalorder %s201, 17
      %s205 = scalar_select %p204, %s201, 17
      %s206 = smul.addr %s205, 3
      %s207 = smul.addr %s203, 54
      %s208 = sadd.s32 %s206, %s207
      %s209 = smul.addr %s208, 4
      %s210 = scalar_lea.vmem %s0, %s209
      %s211 = sadd.s32 %s20, %s21
      %p212 = scmp.lt.s32.totalorder %s19, 1
      %s213 = scalar_select %p212, %s19, 1
      %p214 = scmp.lt.s32.totalorder %s20, 15
      %s215 = scalar_select %p214, %s20, 15
      %s216 = smul.addr %s215, 2
      %s217 = smul.addr %s213, 32
      %s218 = sadd.s32 %s216, %s217
      %s219 = smul.addr %s218, 8
      %s220 = scalar_lea.vmem %s3, %s219
      %p222 = scmp.eq.s32.totalorder %s21, 0
      // Predicated region
      $region33: #{pspnet_forward.6} parent=31 // pred_check
        %p223 = pneg %p222
      $region34: #{pspnet_forward.6} parent=31 // pred_check_branch
        %225 = sbr.rel (%p223) target = $region36
      $region35: #{pspnet_forward.6} parent=31 // pred_region
        %vm226 = vcmask 523264
        %227 = vst.msk [vmem:[#allocation2] sm:$0xff] %vm226, 0.0
        %228 = vst.msk [vmem:[#allocation2 + $0x8] sm:$0xff] %vm226, 0.0
      $region36: #{pspnet_forward.6} parent=31 // pred_fallthru
        _
      %v229 = vld [vmem:[#allocation2] sm:$0xff]
      %v230 = vld [vmem:[#allocation2 + $0x8] sm:$0xff]
      %v231 = vld [vmem:[%s210] sm:$0xf]
      %v232 = vld [vmem:[%s210 + $0x4] sm:$0xf]
      %s233 = smul.u32 %s21, 3
      %s234 = smul.u32 %s233, 8
      %s235 = smul.addr %s234, 4
      %s236 = scalar_lea.vmem %s1, %s235
      %v237 = vld [vmem:[%s236] sm:$0xf]
      %v238 = vld [vmem:[%s236 + $0x4] sm:$0xf]
      %v239 = vld [vmem:[%s236 + $0x8] sm:$0xf]
      %v240 = vld [vmem:[%s236 + $0xc] sm:$0xf]
      %v241 = vld [vmem:[%s236 + $0x10] sm:$0xf]
      %v242 = vld [vmem:[%s236 + $0x14] sm:$0xf]
      %v243 = vld [vmem:[%s236 + $0x18] sm:$0xf]
      %v244 = vld [vmem:[%s236 + $0x1c] sm:$0xf]
      %v247 = vunpack.c.l.b16 %v231
      %v248 = vunpack.c.l.b16 %v232
      %v249 = vpack.c.b16 %v248, %v247
      %v258 = vunpack.c.l.b16 %v237
      %v259 = vunpack.c.l.b16 %v238
      %v260 = vunpack.c.l.b16 %v239
      %v261 = vunpack.c.l.b16 %v240
      %v262 = vunpack.c.l.b16 %v241
      %v263 = vunpack.c.l.b16 %v242
      %v264 = vunpack.c.l.b16 %v243
      %v265 = vunpack.c.l.b16 %v244
      %v266 = vpack.c.b16 %v259, %v258
      %v267 = vpack.c.b16 %v261, %v260
      %v268 = vpack.c.b16 %v263, %v262
      %v269 = vpack.c.b16 %v265, %v264
      %vm274 = vcmask 523264
      %v276 = vsel %vm274, %v249, 0
      %278 = vmatprep.subr.bf16.mxu0 0
      %279 = vmatpush1.bf16.msra.mxu0 %v266
      %280 = vmatprep.subr.bf16.mxu0 0
      %281 = vmatpush1.bf16.msra.mxu0 %v267
      %282 = vmatprep.subr.bf16.mxu0 0
      %283 = vmatpush1.bf16.msra.mxu0 %v268
      %284 = vmatprep.subr.bf16.mxu0 0
      %285 = vmatpush1.bf16.msra.mxu0 %v269
      %286 = vmatprep.subr.bf16.mxu0 0
      %287 = vmatpush1.bf16.msra.mxu0 0
      %288 = vmatprep.subr.bf16.mxu0 0
      %289 = vmatpush1.bf16.msra.mxu0 0
      %290 = vmatprep.subr.bf16.mxu0 0
      %291 = vmatpush1.bf16.msra.mxu0 0
      %292 = vmatprep.subr.bf16.mxu0 0
      %293 = vmatpush1.bf16.msra.mxu0 0
      %294 = vmatprep.subr.bf16.mxu0 0
      %295 = vmatpush1.bf16.msra.mxu0 0
      %296 = vmatprep.subr.bf16.mxu0 0
      %297 = vmatpush1.bf16.msra.mxu0 0
      %298 = vmatprep.subr.bf16.mxu0 0
      %299 = vmatpush1.bf16.msra.mxu0 0
      %300 = vmatprep.subr.bf16.mxu0 0
      %301 = vmatpush1.bf16.msra.mxu0 0
      %302 = vmatprep.subr.bf16.mxu0 0
      %303 = vmatpush1.bf16.msra.mxu0 0
      %304 = vmatprep.subr.bf16.mxu0 0
      %305 = vmatpush1.bf16.msra.mxu0 0
      %306 = vmatprep.subr.bf16.mxu0 0
      %307 = vmatpush1.bf16.msra.mxu0 0
      %308 = vmatprep.subr.bf16.mxu0 0
      %309 = vmatpush1.bf16.msra.mxu0 0
      %310 = vmatprep.mubr.bf16.mxu0 0
      %311 = vmatmul.mubr.bf16.gmra.mrb[0].mxu0 %v276
      %v312 = vpop.f32.mrb[0].mxu0
      %v313 = vadd.f32 0.0, %v312
      %v314 = vpop.f32.mrb[0].mxu0
      %v315 = vpop.f32.mrb[0].mxu0
      %v316 = vadd.f32 0.0, %v315
      %v317 = vpop.f32.mrb[0].mxu0
      %318 = vdwg.mxu0
      %v319 = vadd.f32 %v229, %v313
      %v320 = vadd.f32 %v230, %v316
      %v321 = vld [vmem:[%s210] sm:$0xf]
      %v322 = vld [vmem:[%s210 + $0x4] sm:$0xf]
      %v323 = vld [vmem:[%s210 + $0x8] sm:$0x1]
      %s324 = sadd.s32 %s233, 1
      %s325 = smul.u32 %s324, 8
      %s326 = smul.addr %s325, 4
      %s327 = scalar_lea.vmem %s1, %s326
      %v328 = vld [vmem:[%s327] sm:$0xf]
      %v329 = vld [vmem:[%s327 + $0x4] sm:$0xf]
      %v330 = vld [vmem:[%s327 + $0x8] sm:$0xf]
      %v331 = vld [vmem:[%s327 + $0xc] sm:$0xf]
      %v332 = vld [vmem:[%s327 + $0x10] sm:$0xf]
      %v333 = vld [vmem:[%s327 + $0x14] sm:$0xf]
      %v334 = vld [vmem:[%s327 + $0x18] sm:$0xf]
      %v335 = vld [vmem:[%s327 + $0x1c] sm:$0xf]
      %v339 = vunpack.c.l.b16 %v321
      %v340 = vunpack.c.l.b16 %v322
      %v341 = vunpack.c.l.b16 %v323
      %v342 = vpack.c.b16 %v340, %v339
      %v343 = vpack.c.b16 %v341, %v341
      %vm344 = vsmask.f32 7424
      %v346 = vshrl.u32 %v342, 16
      %v348 = vshll.u32 %v342, 16
      %v350 = vrot.slane %v348, 1
      %v351 = vor.u32 %v346, %v350
      %v353 = vshll.u32 %v343, 16
      %v355 = vrot.slane %v353, 1
      %v356 = vsel %vm344, %v351, %v355
      %v365 = vunpack.c.l.b16 %v328
      %v366 = vunpack.c.l.b16 %v329
      %v367 = vunpack.c.l.b16 %v330
      %v368 = vunpack.c.l.b16 %v331
      %v369 = vunpack.c.l.b16 %v332
      %v370 = vunpack.c.l.b16 %v333
      %v371 = vunpack.c.l.b16 %v334
      %v372 = vunpack.c.l.b16 %v335
      %v373 = vpack.c.b16 %v366, %v365
      %v374 = vpack.c.b16 %v368, %v367
      %v375 = vpack.c.b16 %v370, %v369
      %v376 = vpack.c.b16 %v372, %v371
      %v382 = vsel %vm274, %v356, 0
      %384 = vmatprep.subr.bf16.mxu0 0
      %385 = vmatpush1.bf16.msra.mxu0 %v373
      %386 = vmatprep.subr.bf16.mxu0 0
      %387 = vmatpush1.bf16.msra.mxu0 %v374
      %388 = vmatprep.subr.bf16.mxu0 0
      %389 = vmatpush1.bf16.msra.mxu0 %v375
      %390 = vmatprep.subr.bf16.mxu0 0
      %391 = vmatpush1.bf16.msra.mxu0 %v376
      %392 = vmatprep.subr.bf16.mxu0 0
      %393 = vmatpush1.bf16.msra.mxu0 0
      %394 = vmatprep.subr.bf16.mxu0 0
      %395 = vmatpush1.bf16.msra.mxu0 0
      %396 = vmatprep.subr.bf16.mxu0 0
      %397 = vmatpush1.bf16.msra.mxu0 0
      %398 = vmatprep.subr.bf16.mxu0 0
      %399 = vmatpush1.bf16.msra.mxu0 0
      %400 = vmatprep.subr.bf16.mxu0 0
      %401 = vmatpush1.bf16.msra.mxu0 0
      %402 = vmatprep.subr.bf16.mxu0 0
      %403 = vmatpush1.bf16.msra.mxu0 0
      %404 = vmatprep.subr.bf16.mxu0 0
      %405 = vmatpush1.bf16.msra.mxu0 0
      %406 = vmatprep.subr.bf16.mxu0 0
      %407 = vmatpush1.bf16.msra.mxu0 0
      %408 = vmatprep.subr.bf16.mxu0 0
      %409 = vmatpush1.bf16.msra.mxu0 0
      %410 = vmatprep.subr.bf16.mxu0 0
      %411 = vmatpush1.bf16.msra.mxu0 0
      %412 = vmatprep.subr.bf16.mxu0 0
      %413 = vmatpush1.bf16.msra.mxu0 0
      %414 = vmatprep.subr.bf16.mxu0 0
      %415 = vmatpush1.bf16.msra.mxu0 0
      %416 = vmatprep.mubr.bf16.mxu0 0
      %417 = vmatmul.mubr.bf16.gmra.mrb[0].mxu0 %v382
      %v418 = vpop.f32.mrb[0].mxu0
      %v419 = vadd.f32 0.0, %v418
      %v420 = vpop.f32.mrb[0].mxu0
      %v421 = vpop.f32.mrb[0].mxu0
      %v422 = vadd.f32 0.0, %v421
      %v423 = vpop.f32.mrb[0].mxu0
      %424 = vdwg.mxu0
      %v425 = vadd.f32 %v319, %v419
      %v426 = vadd.f32 %v320, %v422
      %v427 = vld [vmem:[%s210] sm:$0xe]
      %s428 = sadd.s32 %s233, 2
      %s429 = smul.u32 %s428, 8
      %s430 = smul.addr %s429, 4
      %s431 = scalar_lea.vmem %s1, %s430
      %v432 = vld [vmem:[%s431] sm:$0xf]
      %v433 = vld [vmem:[%s431 + $0x4] sm:$0xf]
      %v434 = vld [vmem:[%s431 + $0x8] sm:$0xf]
      %v435 = vld [vmem:[%s431 + $0xc] sm:$0xf]
      %v436 = vld [vmem:[%s431 + $0x10] sm:$0xf]
      %v437 = vld [vmem:[%s431 + $0x14] sm:$0xf]
      %v438 = vld [vmem:[%s431 + $0x18] sm:$0xf]
      %v439 = vld [vmem:[%s431 + $0x1c] sm:$0xf]
      %v441 = vunpack.c.l.b16 %v427
      %v442 = vpack.c.b16 %v340, %v441
      %vm443 = vcmask 1046528
      %v444 = vrot.slane %v442, 1
      %v445 = vrot.slane %v343, 1
      %v446 = vsel %vm443, %v444, %v445
      %v455 = vunpack.c.l.b16 %v432
      %v456 = vunpack.c.l.b16 %v433
      %v457 = vunpack.c.l.b16 %v434
      %v458 = vunpack.c.l.b16 %v435
      %v459 = vunpack.c.l.b16 %v436
      %v460 = vunpack.c.l.b16 %v437
      %v461 = vunpack.c.l.b16 %v438
      %v462 = vunpack.c.l.b16 %v439
      %v463 = vpack.c.b16 %v456, %v455
      %v464 = vpack.c.b16 %v458, %v457
      %v465 = vpack.c.b16 %v460, %v459
      %v466 = vpack.c.b16 %v462, %v461
      %v472 = vsel %vm274, %v446, 0
      %474 = vmatprep.subr.bf16.mxu0 0
      %475 = vmatpush1.bf16.msra.mxu0 %v463
      %476 = vmatprep.subr.bf16.mxu0 0
      %477 = vmatpush1.bf16.msra.mxu0 %v464
      %478 = vmatprep.subr.bf16.mxu0 0
      %479 = vmatpush1.bf16.msra.mxu0 %v465
      %480 = vmatprep.subr.bf16.mxu0 0
      %481 = vmatpush1.bf16.msra.mxu0 %v466
      %482 = vmatprep.subr.bf16.mxu0 0
      %483 = vmatpush1.bf16.msra.mxu0 0
      %484 = vmatprep.subr.bf16.mxu0 0
      %485 = vmatpush1.bf16.msra.mxu0 0
      %486 = vmatprep.subr.bf16.mxu0 0
      %487 = vmatpush1.bf16.msra.mxu0 0
      %488 = vmatprep.subr.bf16.mxu0 0
      %489 = vmatpush1.bf16.msra.mxu0 0
      %490 = vmatprep.subr.bf16.mxu0 0
      %491 = vmatpush1.bf16.msra.mxu0 0
      %492 = vmatprep.subr.bf16.mxu0 0
      %493 = vmatpush1.bf16.msra.mxu0 0
      %494 = vmatprep.subr.bf16.mxu0 0
      %495 = vmatpush1.bf16.msra.mxu0 0
      %496 = vmatprep.subr.bf16.mxu0 0
      %497 = vmatpush1.bf16.msra.mxu0 0
      %498 = vmatprep.subr.bf16.mxu0 0
      %499 = vmatpush1.bf16.msra.mxu0 0
      %500 = vmatprep.subr.bf16.mxu0 0
      %501 = vmatpush1.bf16.msra.mxu0 0
      %502 = vmatprep.subr.bf16.mxu0 0
      %503 = vmatpush1.bf16.msra.mxu0 0
      %504 = vmatprep.subr.bf16.mxu0 0
      %505 = vmatpush1.bf16.msra.mxu0 0
      %506 = vmatprep.mubr.bf16.mxu0 0
      %507 = vmatmul.mubr.bf16.gmra.mrb[0].mxu0 %v472
      %v508 = vpop.f32.mrb[0].mxu0
      %v509 = vadd.f32 0.0, %v508
      %v510 = vpop.f32.mrb[0].mxu0
      %v511 = vpop.f32.mrb[0].mxu0
      %v512 = vadd.f32 0.0, %v511
      %v513 = vpop.f32.mrb[0].mxu0
      %514 = vdwg.mxu0
      %v515 = vadd.f32 %v425, %v509
      %v516 = vadd.f32 %v426, %v512
      %517 = vst.msk [vmem:[#allocation2] sm:$0xff] %vm274, %v515
      %518 = vst.msk [vmem:[#allocation2 + $0x8] sm:$0xff] %vm274, %v516
      %p519 = scmp.eq.s32.totalorder %s21, 2
      // Predicated region
      $region37: #{pspnet_forward.6} parent=31 // pred_check
        %p520 = pneg %p519
      $region38: #{pspnet_forward.6} parent=31 // pred_check_branch
        %522 = sbr.rel (%p520) target = $region40
      $region39: #{pspnet_forward.6} parent=31 // pred_region
        %v523 = vld [vmem:[#allocation2] sm:$0xff]
        %v524 = vld [vmem:[#allocation2 + $0x8] sm:$0xff]
        %v525 = vld [vmem:[%s2] sm:$0x1]
        %v527 = vlaneseq
        %v528 = vshrl.u32 %v527, 7
        %v529 = vsub.s32 0, %v528
        %v530 = vrot.slane %v525, %v529
        %v532 = vadd.f32 %v523, %v530
        %v533 = vadd.f32 %v524, %v530
        %v534 = vmax.f32 %v532, 0.0
        %v535 = vmax.f32 %v533, 0.0
        %536 = vst.msk [vmem:[%s220] sm:$0xff] %vm274, %v534
        %537 = vst.msk [vmem:[%s220 + $0x8] sm:$0xff] %vm274, %v535
      $region40: #{pspnet_forward.6} parent=31 // pred_fallthru
        _
      %p538 = scmp.lt.s32.totalorder %s19, 1
      %s539 = scalar_select %p538, %s19, 1
      %p540 = scmp.lt.s32.totalorder %s20, 15
      %s541 = scalar_select %p540, %s20, 15
      %s542 = smul.addr %s541, 2
      %s543 = smul.addr %s539, 32
      %s544 = sadd.s32 %s542, %s543
      %s545 = smul.addr %s544, 8
      %s546 = scalar_lea.vmem %s3, %s545
      // Predicated region
      $region41: #{pspnet_forward.6} parent=31 // pred_check
        %p547 = pneg %p125
      $region42: #{pspnet_forward.6} parent=31 // pred_check_branch
        %549 = sbr.rel (%p547) target = $region44
      $region43: #{pspnet_forward.6} parent=31 // pred_region
        _
      $region44: #{pspnet_forward.6} parent=31 // pred_fallthru
        _
    $region32: #{pspnet_forward.6} parent=5 // pred_fallthru
      _
    %p550 = scmp.le.s32.totalorder 2, %s9
    // Predicated region
    $region45: #{pspnet_forward.6} parent=5 // pred_check
      %p551 = pneg %p550
    $region46: #{pspnet_forward.6} parent=5 // pred_check_branch
      %553 = sbr.rel (%p551) target = $region48
    $region47: #{pspnet_forward.6} parent=5 // pred_region
      %s554 = ssub.s32 %s9, 2
      // Predicated region
      $region49: #{pspnet_forward.6} parent=47 // pred_check
        %p555 = pneg %p131
      $region50: #{pspnet_forward.6} parent=47 // pred_check_branch
        %557 = sbr.rel (%p555) target = $region52
      $region51: #{pspnet_forward.6} parent=47 // pred_region
        %p558 = scmp.lt.s32.totalorder %s22, 1
        %s559 = scalar_select %p558, %s22, 1
        %p560 = scmp.lt.s32.totalorder %s23, 15
        %s561 = scalar_select %p560, %s23, 15
        %s562 = smul.addr %s561, 2
        %s563 = smul.addr %s559, 32
        %s564 = sadd.s32 %s562, %s563
        %s565 = smul.addr %s564, 8
        %s566 = scalar_lea.vmem %s3, %s565
      $region52: #{pspnet_forward.6} parent=47 // pred_fallthru
        _
    $region48: #{pspnet_forward.6} parent=5 // pred_fallthru
      _
  $region6: #{pspnet_forward.6} parent=0 // loop_footer
    %s13 = sadd.s32 1, %s9
  $region7: #{pspnet_forward.6} parent=0 // loop_footer_branch
    %8 = sbr.rel target = $region3
  $region8: #{pspnet_forward.6} parent=0 // loop_exit
    _

// kernel: pspnet_forward.7
$region0: #{pspnet_forward.7}
  #allocation0 [shape = 'u32[]', space=smem, size = 0x4, offset = 0x4, fixed_abs, tag = 'smem constant byte address 0x4 - core index']
  #allocation1 [shape = 'u32[144,128]{1,0:T(1,128)}', space=vmem, size = 0x12000, scoped, tag = 'internal scratch']
  #allocation2 [shape = 'f32[256,128]{1,0:T(8,128)}', space=vmem, size = 0x20000, scoped, tag = 'scratch operand']
  %s0 = inlined_call_operand.vmem [shape: bf16[512,64], index: 0, kind: input, shape index: {}]
  %s1 = inlined_call_operand.vmem [shape: bf16[64,5], index: 1, kind: input, shape index: {}]
  %s2 = inlined_call_operand.vmem [shape: f32[1,5], index: 2, kind: input, shape index: {}]
  %s3 = inlined_call_operand.vmem [shape: f32[512,5], index: 3, kind: output, shape index: {}]
  %s4 = sld [smem:[#allocation0]]
  $region53: #{pspnet_forward.7} parent=0
    _
  %s6 = ssub.s32 1, %s4
  %s7 = scalar_select 0, %s6, %s4
  loop: start=0, step=1, limit=4
  $region2: #{pspnet_forward.7} parent=0 // loop_pre_header
    _
  $region3: #{pspnet_forward.7} parent=0 // loop_header
    %s9 = sphi 0, %s13
    %p10 = scmp.ge.s32.totalorder %s9, 4
    %s16 = sphi 0, %s35
    %s17 = sphi 0, %s31
    %s18 = sphi 0, %s27
    %s19 = sphi 0, %s16
    %s20 = sphi 0, %s17
    %s21 = sphi 0, %s18
    %s22 = sphi 0, %s19
    %s23 = sphi 0, %s20
    %s24 = sphi 0, %s21
    %s40 = sphi 0, %s42
    %s43 = sphi 0, %s40
    %s44 = sphi 0, %s43
    %s60 = sphi 0, %s44
    %s68 = sphi 0, %s70
    %s71 = sphi 0, %s68
    %s72 = sphi 0, %s71
    %s88 = sphi 0, %s72
    %s94 = sphi 0, %s96
    %s97 = sphi 0, %s94
    %s98 = sphi 0, %s97
    %s114 = sphi 0, %s98
    %s122 = sphi 0, %s124
    %s125 = sphi 0, %s122
    %s126 = sphi 0, %s125
    %s142 = sphi 0, %s126
  $region4: #{pspnet_forward.7} parent=0 // loop_header_branch
    %12 = sbr.rel (%p10) target = $region8
  $region5: #{pspnet_forward.7} parent=0 // loop_body
    %s14 = ssub.s32 %s9, 1
    %s15 = ssub.s32 %s9, 2
    %s25 = sadd.s32 1, %s18
    %p26 = scmp.ge.s32.totalorder %s25, 1
    %s27 = scalar_select %p26, 0, %s25
    %s28 = sadd.s32 1, %s17
    %s29 = scalar_select %p26, %s28, %s17
    %p30 = scmp.ge.s32.totalorder %s29, 1
    %s31 = scalar_select %p30, 0, %s29
    %s32 = sadd.s32 1, %s16
    %s33 = scalar_select %p30, %s32, %s16
    %p34 = scmp.ge.s32.totalorder %s33, 2
    %s35 = scalar_select %p34, 0, %s33
    %s36 = ssub.s32 %s16, %s35
    %s37 = ssub.s32 %s18, %s27
    %s38 = sor.u32 %s36, %s37
    %p39 = scmp.eq.s32.totalorder %s38, 0
    %s41 = sadd.s32 %s40, 1
    %s42 = scalar_select %p39, %s40, %s41
    %p45 = pneg %p39
    %p46 = scmp.eq.s32.totalorder %s9, 1
    %p47 = por %p45, %p46
    %p48 = scmp.ne.s32.totalorder %s40, %s43
    %p49 = scmp.eq.s32.totalorder %s9, 0
    %p50 = por %p48, %p49
    %p51 = scmp.ne.s32.totalorder %s40, %s43
    %p52 = scmp.eq.s32.totalorder %s14, 1
    %p53 = por %p51, %p52
    %p54 = scmp.ne.s32.totalorder %s43, %s44
    %p55 = scmp.eq.s32.totalorder %s14, 0
    %p56 = por %p54, %p55
    %p57 = scmp.ne.s32.totalorder %s43, %s44
    %p58 = scmp.eq.s32.totalorder %s15, 1
    %p59 = por %p57, %p58
    %p61 = scmp.ne.s32.totalorder %s44, %s60
    %p62 = scmp.eq.s32.totalorder %s15, 0
    %p63 = por %p61, %p62
    %s64 = ssub.s32 %s18, %s27
    %s65 = ssub.s32 %s17, %s31
    %s66 = sor.u32 %s64, %s65
    %p67 = scmp.eq.s32.totalorder %s66, 0
    %s69 = sadd.s32 %s68, 1
    %s70 = scalar_select %p67, %s68, %s69
    %p73 = pneg %p67
    %p74 = scmp.eq.s32.totalorder %s9, 1
    %p75 = por %p73, %p74
    %p76 = scmp.ne.s32.totalorder %s68, %s71
    %p77 = scmp.eq.s32.totalorder %s9, 0
    %p78 = por %p76, %p77
    %p79 = scmp.ne.s32.totalorder %s68, %s71
    %p80 = scmp.eq.s32.totalorder %s14, 1
    %p81 = por %p79, %p80
    %p82 = scmp.ne.s32.totalorder %s71, %s72
    %p83 = scmp.eq.s32.totalorder %s14, 0
    %p84 = por %p82, %p83
    %p85 = scmp.ne.s32.totalorder %s71, %s72
    %p86 = scmp.eq.s32.totalorder %s15, 1
    %p87 = por %p85, %p86
    %p89 = scmp.ne.s32.totalorder %s72, %s88
    %p90 = scmp.eq.s32.totalorder %s15, 0
    %p91 = por %p89, %p90
    %s92 = ssub.s32 %s17, %s31
    %p93 = scmp.eq.s32.totalorder %s92, 0
    %s95 = sadd.s32 %s94, 1
    %s96 = scalar_select %p93, %s94, %s95
    %p99 = pneg %p93
    %p100 = scmp.eq.s32.totalorder %s9, 1
    %p101 = por %p99, %p100
    %p102 = scmp.ne.s32.totalorder %s94, %s97
    %p103 = scmp.eq.s32.totalorder %s9, 0
    %p104 = por %p102, %p103
    %p105 = scmp.ne.s32.totalorder %s94, %s97
    %p106 = scmp.eq.s32.totalorder %s14, 1
    %p107 = por %p105, %p106
    %p108 = scmp.ne.s32.totalorder %s97, %s98
    %p109 = scmp.eq.s32.totalorder %s14, 0
    %p110 = por %p108, %p109
    %p111 = scmp.ne.s32.totalorder %s97, %s98
    %p112 = scmp.eq.s32.totalorder %s15, 1
    %p113 = por %p111, %p112
    %p115 = scmp.ne.s32.totalorder %s98, %s114
    %p116 = scmp.eq.s32.totalorder %s15, 0
    %p117 = por %p115, %p116
    %s118 = ssub.s32 %s16, %s35
    %s119 = ssub.s32 %s17, %s31
    %s120 = sor.u32 %s118, %s119
    %p121 = scmp.eq.s32.totalorder %s120, 0
    %s123 = sadd.s32 %s122, 1
    %s124 = scalar_select %p121, %s122, %s123
    %p127 = pneg %p121
    %p128 = scmp.eq.s32.totalorder %s9, 1
    %p129 = por %p127, %p128
    %p130 = scmp.ne.s32.totalorder %s122, %s125
    %p131 = scmp.eq.s32.totalorder %s9, 0
    %p132 = por %p130, %p131
    %p133 = scmp.ne.s32.totalorder %s122, %s125
    %p134 = scmp.eq.s32.totalorder %s14, 1
    %p135 = por %p133, %p134
    %p136 = scmp.ne.s32.totalorder %s125, %s126
    %p137 = scmp.eq.s32.totalorder %s14, 0
    %p138 = por %p136, %p137
    %p139 = scmp.ne.s32.totalorder %s125, %s126
    %p140 = scmp.eq.s32.totalorder %s15, 1
    %p141 = por %p139, %p140
    %p143 = scmp.ne.s32.totalorder %s126, %s142
    %p144 = scmp.eq.s32.totalorder %s15, 0
    %p145 = por %p143, %p144
    %p146 = scmp.le.s32.totalorder 1, %s9
    %p147 = scmp.lt.s32.totalorder %s9, 3
    %p148 = pnand %p146, %p147
    %p149 = pneg %p148
    // Predicated region
    $region9: #{pspnet_forward.7} parent=5 // pred_check
      _
    $region10: #{pspnet_forward.7} parent=5 // pred_check_branch
      %151 = sbr.rel (%p148) target = $region12
    $region11: #{pspnet_forward.7} parent=5 // pred_region
      %s152 = ssub.s32 %s9, 1
      // Predicated region
      $region13: #{pspnet_forward.7} parent=11 // pred_check
        %p153 = pneg %p84
      $region14: #{pspnet_forward.7} parent=11 // pred_check_branch
        %155 = sbr.rel (%p153) target = $region16
      $region15: #{pspnet_forward.7} parent=11 // pred_region
        %s156 = smul.u32 8, %s21
        %p157 = scmp.lt.s32.totalorder %s156, 7
        %s158 = scalar_select %p157, %s156, 7
        %p159 = scmp.lt.s32.totalorder %s20, 0
        %s160 = scalar_select %p159, %s20, 0
        %s161 = sadd.s32 %s160, %s158
        %s162 = smul.addr %s161, 4
        %s163 = scalar_lea.vmem %s1, %s162
        %s164 = smul.u32 8, %s21
      $region16: #{pspnet_forward.7} parent=11 // pred_fallthru
        _
      // Predicated region
      $region17: #{pspnet_forward.7} parent=11 // pred_check
        %p165 = pneg %p110
      $region18: #{pspnet_forward.7} parent=11 // pred_check_branch
        %167 = sbr.rel (%p165) target = $region20
      $region19: #{pspnet_forward.7} parent=11 // pred_region
        %p168 = scmp.lt.s32.totalorder %s20, 0
        %s169 = scalar_select %p168, %s20, 0
        %s170 = scalar_lea.vmem %s2, %s169
      $region20: #{pspnet_forward.7} parent=11 // pred_fallthru
        _
    $region12: #{pspnet_forward.7} parent=5 // pred_fallthru
      _
    %p171 = scmp.lt.s32.totalorder %s9, 2
    // Predicated region
    $region21: #{pspnet_forward.7} parent=5 // pred_check
      %p172 = pneg %p171
    $region22: #{pspnet_forward.7} parent=5 // pred_check_branch
      %174 = sbr.rel (%p172) target = $region24
    $region23: #{pspnet_forward.7} parent=5 // pred_region
      // Predicated region
      $region25: #{pspnet_forward.7} parent=23 // pred_check
        %p175 = pneg %p50
      $region26: #{pspnet_forward.7} parent=23 // pred_check_branch
        %177 = sbr.rel (%p175) target = $region28
      $region27: #{pspnet_forward.7} parent=23 // pred_region
        %s178 = smul.u32 32, %s16
        %p179 = scmp.lt.s32.totalorder %s178, 63
        %s180 = scalar_select %p179, %s178, 63
        %p181 = scmp.lt.s32.totalorder %s18, 0
        %s182 = scalar_select %p181, %s18, 0
        %s183 = sadd.s32 %s182, %s180
        %s184 = smul.addr %s183, 4
        %s185 = scalar_lea.vmem %s0, %s184
        %s186 = smul.u32 32, %s16
      $region28: #{pspnet_forward.7} parent=23 // pred_fallthru
        _
    $region24: #{pspnet_forward.7} parent=5 // pred_fallthru
      _
    %p187 = scmp.le.s32.totalorder 1, %s9
    %p188 = scmp.lt.s32.totalorder %s9, 3
    %p189 = pnand %p187, %p188
    %p190 = pneg %p189
    // Predicated region
    $region29: #{pspnet_forward.7} parent=5 // pred_check
      _
    $region30: #{pspnet_forward.7} parent=5 // pred_check_branch
      %192 = sbr.rel (%p189) target = $region32
    $region31: #{pspnet_forward.7} parent=5 // pred_region
      %s193 = ssub.s32 %s9, 1
      %s194 = smul.u32 32, %s19
      %p195 = scmp.lt.s32.totalorder %s194, 63
      %s196 = scalar_select %p195, %s194, 63
      %p197 = scmp.lt.s32.totalorder %s21, 0
      %s198 = scalar_select %p197, %s21, 0
      %s199 = sadd.s32 %s198, %s196
      %s200 = smul.addr %s199, 4
      %s201 = scalar_lea.vmem %s0, %s200
      %p202 = pneg %p56
      %p203 = pneg %p53
      %s204 = smul.u32 8, %s21
      %p205 = scmp.lt.s32.totalorder %s204, 7
      %s206 = scalar_select %p205, %s204, 7
      %p207 = scmp.lt.s32.totalorder %s20, 0
      %s208 = scalar_select %p207, %s20, 0
      %s209 = sadd.s32 %s208, %s206
      %s210 = smul.addr %s209, 4
      %s211 = scalar_lea.vmem %s1, %s210
      %p212 = pneg %p84
      %p213 = pneg %p81
      %p214 = scmp.lt.s32.totalorder %s20, 0
      %s215 = scalar_select %p214, %s20, 0
      %s216 = scalar_lea.vmem %s2, %s215
      %p217 = pneg %p110
      %p218 = pneg %p107
      %p219 = pneg %p138
      %p220 = pneg %p135
      %s221 = smul.u32 32, %s19
      %p222 = scmp.lt.s32.totalorder %s221, 63
      %s223 = scalar_select %p222, %s221, 63
      %p224 = scmp.lt.s32.totalorder %s20, 0
      %s225 = scalar_select %p224, %s20, 0
      %s226 = sadd.s32 %s225, %s223
      %s227 = smul.addr %s226, 8
      %s228 = scalar_lea.vmem %s3, %s227
      %s229 = smul.u32 32, %s19
      %p230 = scmp.lt.s32.totalorder %s229, 63
      %s231 = scalar_select %p230, %s229, 63
      %p232 = scmp.lt.s32.totalorder %s21, 0
      %s233 = scalar_select %p232, %s21, 0
      %s234 = sadd.s32 %s233, %s231
      %s235 = smul.addr %s234, 4
      %s236 = scalar_lea.vmem %s0, %s235
      %s237 = smul.u32 32, %s19
      %s238 = smul.u32 8, %s21
      %p239 = scmp.lt.s32.totalorder %s238, 7
      %s240 = scalar_select %p239, %s238, 7
      %p241 = scmp.lt.s32.totalorder %s20, 0
      %s242 = scalar_select %p241, %s20, 0
      %s243 = sadd.s32 %s242, %s240
      %s244 = smul.addr %s243, 4
      %s245 = scalar_lea.vmem %s1, %s244
      %s246 = smul.u32 8, %s21
      %p247 = scmp.lt.s32.totalorder %s20, 0
      %s248 = scalar_select %p247, %s20, 0
      %s249 = scalar_lea.vmem %s2, %s248
      %s250 = smul.u32 32, %s19
      %p251 = scmp.lt.s32.totalorder %s250, 63
      %s252 = scalar_select %p251, %s250, 63
      %p253 = scmp.lt.s32.totalorder %s20, 0
      %s254 = scalar_select %p253, %s20, 0
      %s255 = sadd.s32 %s254, %s252
      %s256 = smul.addr %s255, 8
      %s257 = scalar_lea.vmem %s3, %s256
      %s258 = smul.u32 32, %s19
      %p260 = scmp.eq.s32.totalorder %s21, 0
      // Predicated region
      $region33: #{pspnet_forward.7} parent=31 // pred_check
        %p261 = pneg %p260
      $region34: #{pspnet_forward.7} parent=31 // pred_check_branch
        %263 = sbr.rel (%p261) target = $region36
      $region35: #{pspnet_forward.7} parent=31 // pred_region
        %264 = vst [vmem:[#allocation2] sm:$0xff] 0.0
        %265 = vst [vmem:[#allocation2 + $0x8] sm:$0xff] 0.0
        %266 = vst [vmem:[#allocation2 + $0x10] sm:$0xff] 0.0
        %267 = vst [vmem:[#allocation2 + $0x18] sm:$0xff] 0.0
        %268 = vst [vmem:[#allocation2 + $0x20] sm:$0xff] 0.0
        %269 = vst [vmem:[#allocation2 + $0x28] sm:$0xff] 0.0
        %270 = vst [vmem:[#allocation2 + $0x30] sm:$0xff] 0.0
        %271 = vst [vmem:[#allocation2 + $0x38] sm:$0xff] 0.0
        %272 = vst [vmem:[#allocation2 + $0x40] sm:$0xff] 0.0
        %273 = vst [vmem:[#allocation2 + $0x48] sm:$0xff] 0.0
        %274 = vst [vmem:[#allocation2 + $0x50] sm:$0xff] 0.0
        %275 = vst [vmem:[#allocation2 + $0x58] sm:$0xff] 0.0
        %276 = vst [vmem:[#allocation2 + $0x60] sm:$0xff] 0.0
        %277 = vst [vmem:[#allocation2 + $0x68] sm:$0xff] 0.0
        %278 = vst [vmem:[#allocation2 + $0x70] sm:$0xff] 0.0
        %279 = vst [vmem:[#allocation2 + $0x78] sm:$0xff] 0.0
        %280 = vst [vmem:[#allocation2 + $0x80] sm:$0xff] 0.0
        %281 = vst [vmem:[#allocation2 + $0x88] sm:$0xff] 0.0
        %282 = vst [vmem:[#allocation2 + $0x90] sm:$0xff] 0.0
        %283 = vst [vmem:[#allocation2 + $0x98] sm:$0xff] 0.0
        %284 = vst [vmem:[#allocation2 + $0xa0] sm:$0xff] 0.0
        %285 = vst [vmem:[#allocation2 + $0xa8] sm:$0xff] 0.0
        %286 = vst [vmem:[#allocation2 + $0xb0] sm:$0xff] 0.0
        %287 = vst [vmem:[#allocation2 + $0xb8] sm:$0xff] 0.0
        %288 = vst [vmem:[#allocation2 + $0xc0] sm:$0xff] 0.0
        %289 = vst [vmem:[#allocation2 + $0xc8] sm:$0xff] 0.0
        %290 = vst [vmem:[#allocation2 + $0xd0] sm:$0xff] 0.0
        %291 = vst [vmem:[#allocation2 + $0xd8] sm:$0xff] 0.0
        %292 = vst [vmem:[#allocation2 + $0xe0] sm:$0xff] 0.0
        %293 = vst [vmem:[#allocation2 + $0xe8] sm:$0xff] 0.0
        %294 = vst [vmem:[#allocation2 + $0xf0] sm:$0xff] 0.0
        %295 = vst [vmem:[#allocation2 + $0xf8] sm:$0xff] 0.0
      $region36: #{pspnet_forward.7} parent=31 // pred_fallthru
        _
      %v296 = vld [vmem:[#allocation2] sm:$0xff]
      %v297 = vld [vmem:[#allocation2 + $0x8] sm:$0xff]
      %v298 = vld [vmem:[#allocation2 + $0x10] sm:$0xff]
      %v299 = vld [vmem:[#allocation2 + $0x18] sm:$0xff]
      %v300 = vld [vmem:[#allocation2 + $0x20] sm:$0xff]
      %v301 = vld [vmem:[#allocation2 + $0x28] sm:$0xff]
      %v302 = vld [vmem:[#allocation2 + $0x30] sm:$0xff]
      %v303 = vld [vmem:[#allocation2 + $0x38] sm:$0xff]
      %v304 = vld [vmem:[#allocation2 + $0x40] sm:$0xff]
      %v305 = vld [vmem:[#allocation2 + $0x48] sm:$0xff]
      %v306 = vld [vmem:[#allocation2 + $0x50] sm:$0xff]
      %v307 = vld [vmem:[#allocation2 + $0x58] sm:$0xff]
      %v308 = vld [vmem:[#allocation2 + $0x60] sm:$0xff]
      %v309 = vld [vmem:[#allocation2 + $0x68] sm:$0xff]
      %v310 = vld [vmem:[#allocation2 + $0x70] sm:$0xff]
      %v311 = vld [vmem:[#allocation2 + $0x78] sm:$0xff]
      %v312 = vld [vmem:[#allocation2 + $0x80] sm:$0xff]
      %v313 = vld [vmem:[#allocation2 + $0x88] sm:$0xff]
      %v314 = vld [vmem:[#allocation2 + $0x90] sm:$0xff]
      %v315 = vld [vmem:[#allocation2 + $0x98] sm:$0xff]
      %v316 = vld [vmem:[#allocation2 + $0xa0] sm:$0xff]
      %v317 = vld [vmem:[#allocation2 + $0xa8] sm:$0xff]
      %v318 = vld [vmem:[#allocation2 + $0xb0] sm:$0xff]
      %v319 = vld [vmem:[#allocation2 + $0xb8] sm:$0xff]
      %v320 = vld [vmem:[#allocation2 + $0xc0] sm:$0xff]
      %v321 = vld [vmem:[#allocation2 + $0xc8] sm:$0xff]
      %v322 = vld [vmem:[#allocation2 + $0xd0] sm:$0xff]
      %v323 = vld [vmem:[#allocation2 + $0xd8] sm:$0xff]
      %v324 = vld [vmem:[#allocation2 + $0xe0] sm:$0xff]
      %v325 = vld [vmem:[#allocation2 + $0xe8] sm:$0xff]
      %v326 = vld [vmem:[#allocation2 + $0xf0] sm:$0xff]
      %v327 = vld [vmem:[#allocation2 + $0xf8] sm:$0xff]
      %v328 = vld [vmem:[%s236] sm:$0xf]
      %v329 = vld [vmem:[%s236 + $0x4] sm:$0xf]
      %v330 = vld [vmem:[%s236 + $0x8] sm:$0xf]
      %v331 = vld [vmem:[%s236 + $0xc] sm:$0xf]
      %v332 = vld [vmem:[%s236 + $0x10] sm:$0xf]
      %v333 = vld [vmem:[%s236 + $0x14] sm:$0xf]
      %v334 = vld [vmem:[%s236 + $0x18] sm:$0xf]
      %v335 = vld [vmem:[%s236 + $0x1c] sm:$0xf]
      %v336 = vld [vmem:[%s236 + $0x20] sm:$0xf]
      %v337 = vld [vmem:[%s236 + $0x24] sm:$0xf]
      %v338 = vld [vmem:[%s236 + $0x28] sm:$0xf]
      %v339 = vld [vmem:[%s236 + $0x2c] sm:$0xf]
      %v340 = vld [vmem:[%s236 + $0x30] sm:$0xf]
      %v341 = vld [vmem:[%s236 + $0x34] sm:$0xf]
      %v342 = vld [vmem:[%s236 + $0x38] sm:$0xf]
      %v343 = vld [vmem:[%s236 + $0x3c] sm:$0xf]
      %v344 = vld [vmem:[%s236 + $0x40] sm:$0xf]
      %v345 = vld [vmem:[%s236 + $0x44] sm:$0xf]
      %v346 = vld [vmem:[%s236 + $0x48] sm:$0xf]
      %v347 = vld [vmem:[%s236 + $0x4c] sm:$0xf]
      %v348 = vld [vmem:[%s236 + $0x50] sm:$0xf]
      %v349 = vld [vmem:[%s236 + $0x54] sm:$0xf]
      %v350 = vld [vmem:[%s236 + $0x58] sm:$0xf]
      %v351 = vld [vmem:[%s236 + $0x5c] sm:$0xf]
      %v352 = vld [vmem:[%s236 + $0x60] sm:$0xf]
      %v353 = vld [vmem:[%s236 + $0x64] sm:$0xf]
      %v354 = vld [vmem:[%s236 + $0x68] sm:$0xf]
      %v355 = vld [vmem:[%s236 + $0x6c] sm:$0xf]
      %v356 = vld [vmem:[%s236 + $0x70] sm:$0xf]
      %v357 = vld [vmem:[%s236 + $0x74] sm:$0xf]
      %v358 = vld [vmem:[%s236 + $0x78] sm:$0xf]
      %v359 = vld [vmem:[%s236 + $0x7c] sm:$0xf]
      %v360 = vld [vmem:[%s245] sm:$0xf]
      %v361 = vld [vmem:[%s245 + $0x4] sm:$0xf]
      %v362 = vld [vmem:[%s245 + $0x8] sm:$0xf]
      %v363 = vld [vmem:[%s245 + $0xc] sm:$0xf]
      %v364 = vld [vmem:[%s245 + $0x10] sm:$0xf]
      %v365 = vld [vmem:[%s245 + $0x14] sm:$0xf]
      %v366 = vld [vmem:[%s245 + $0x18] sm:$0xf]
      %v367 = vld [vmem:[%s245 + $0x1c] sm:$0xf]
      %v400 = vunpack.c.l.b16 %v328
      %v401 = vunpack.c.l.b16 %v329
      %v402 = vunpack.c.l.b16 %v330
      %v403 = vunpack.c.l.b16 %v331
      %v404 = vunpack.c.l.b16 %v332
      %v405 = vunpack.c.l.b16 %v333
      %v406 = vunpack.c.l.b16 %v334
      %v407 = vunpack.c.l.b16 %v335
      %v408 = vunpack.c.l.b16 %v336
      %v409 = vunpack.c.l.b16 %v337
      %v410 = vunpack.c.l.b16 %v338
      %v411 = vunpack.c.l.b16 %v339
      %v412 = vunpack.c.l.b16 %v340
      %v413 = vunpack.c.l.b16 %v341
      %v414 = vunpack.c.l.b16 %v342
      %v415 = vunpack.c.l.b16 %v343
      %v416 = vunpack.c.l.b16 %v344
      %v417 = vunpack.c.l.b16 %v345
      %v418 = vunpack.c.l.b16 %v346
      %v419 = vunpack.c.l.b16 %v347
      %v420 = vunpack.c.l.b16 %v348
      %v421 = vunpack.c.l.b16 %v349
      %v422 = vunpack.c.l.b16 %v350
      %v423 = vunpack.c.l.b16 %v351
      %v424 = vunpack.c.l.b16 %v352
      %v425 = vunpack.c.l.b16 %v353
      %v426 = vunpack.c.l.b16 %v354
      %v427 = vunpack.c.l.b16 %v355
      %v428 = vunpack.c.l.b16 %v356
      %v429 = vunpack.c.l.b16 %v357
      %v430 = vunpack.c.l.b16 %v358
      %v431 = vunpack.c.l.b16 %v359
      %v432 = vpack.c.b16 %v401, %v400
      %v433 = vpack.c.b16 %v403, %v402
      %v434 = vpack.c.b16 %v405, %v404
      %v435 = vpack.c.b16 %v407, %v406
      %v436 = vpack.c.b16 %v409, %v408
      %v437 = vpack.c.b16 %v411, %v410
      %v438 = vpack.c.b16 %v413, %v412
      %v439 = vpack.c.b16 %v415, %v414
      %v440 = vpack.c.b16 %v417, %v416
      %v441 = vpack.c.b16 %v419, %v418
      %v442 = vpack.c.b16 %v421, %v420
      %v443 = vpack.c.b16 %v423, %v422
      %v444 = vpack.c.b16 %v425, %v424
      %v445 = vpack.c.b16 %v427, %v426
      %v446 = vpack.c.b16 %v429, %v428
      %v447 = vpack.c.b16 %v431, %v430
      %v456 = vunpack.c.l.b16 %v360
      %v457 = vunpack.c.l.b16 %v361
      %v458 = vunpack.c.l.b16 %v362
      %v459 = vunpack.c.l.b16 %v363
      %v460 = vunpack.c.l.b16 %v364
      %v461 = vunpack.c.l.b16 %v365
      %v462 = vunpack.c.l.b16 %v366
      %v463 = vunpack.c.l.b16 %v367
      %v464 = vpack.c.b16 %v457, %v456
      %v465 = vpack.c.b16 %v459, %v458
      %v466 = vpack.c.b16 %v461, %v460
      %v467 = vpack.c.b16 %v463, %v462
      %vm472 = vcmask 523264
      %v474 = vsel %vm472, %v432, 0
      %v477 = vsel %vm472, %v433, 0
      %v480 = vsel %vm472, %v434, 0
      %v483 = vsel %vm472, %v435, 0
      %v486 = vsel %vm472, %v436, 0
      %v489 = vsel %vm472, %v437, 0
      %v492 = vsel %vm472, %v438, 0
      %v495 = vsel %vm472, %v439, 0
      %v498 = vsel %vm472, %v440, 0
      %v501 = vsel %vm472, %v441, 0
      %v504 = vsel %vm472, %v442, 0
      %v507 = vsel %vm472, %v443, 0
      %v510 = vsel %vm472, %v444, 0
      %v513 = vsel %vm472, %v445, 0
      %v516 = vsel %vm472, %v446, 0
      %v519 = vsel %vm472, %v447, 0
      %521 = vmatprep.subr.bf16.mxu0 0
      %522 = vmatpush1.bf16.msra.mxu0 %v464
      %523 = vmatprep.subr.bf16.mxu0 0
      %524 = vmatpush1.bf16.msra.mxu0 %v465
      %525 = vmatprep.subr.bf16.mxu0 0
      %526 = vmatpush1.bf16.msra.mxu0 %v466
      %527 = vmatprep.subr.bf16.mxu0 0
      %528 = vmatpush1.bf16.msra.mxu0 %v467
      %529 = vmatprep.subr.bf16.mxu0 0
      %530 = vmatpush1.bf16.msra.mxu0 0
      %531 = vmatprep.subr.bf16.mxu0 0
      %532 = vmatpush1.bf16.msra.mxu0 0
      %533 = vmatprep.subr.bf16.mxu0 0
      %534 = vmatpush1.bf16.msra.mxu0 0
      %535 = vmatprep.subr.bf16.mxu0 0
      %536 = vmatpush1.bf16.msra.mxu0 0
      %537 = vmatprep.subr.bf16.mxu0 0
      %538 = vmatpush1.bf16.msra.mxu0 0
      %539 = vmatprep.subr.bf16.mxu0 0
      %540 = vmatpush1.bf16.msra.mxu0 0
      %541 = vmatprep.subr.bf16.mxu0 0
      %542 = vmatpush1.bf16.msra.mxu0 0
      %543 = vmatprep.subr.bf16.mxu0 0
      %544 = vmatpush1.bf16.msra.mxu0 0
      %545 = vmatprep.subr.bf16.mxu0 0
      %546 = vmatpush1.bf16.msra.mxu0 0
      %547 = vmatprep.subr.bf16.mxu0 0
      %548 = vmatpush1.bf16.msra.mxu0 0
      %549 = vmatprep.subr.bf16.mxu0 0
      %550 = vmatpush1.bf16.msra.mxu0 0
      %551 = vmatprep.subr.bf16.mxu0 0
      %552 = vmatpush1.bf16.msra.mxu0 0
      %553 = vmatprep.mubr.bf16.mxu0 0
      %554 = vmatmul.mubr.bf16.gmra.mrb[0].mxu0 %v474
      %v555 = vpop.f32.mrb[0].mxu0
      %v556 = vadd.f32 0.0, %v555
      %v557 = vpop.f32.mrb[0].mxu0
      %v558 = vpop.f32.mrb[0].mxu0
      %v559 = vadd.f32 0.0, %v558
      %v560 = vpop.f32.mrb[0].mxu0
      %561 = vmatprep.mubr.bf16.mxu0 0
      %562 = vmatmul.mubr.bf16.gmra.mrb[0].mxu0 %v477
      %v563 = vpop.f32.mrb[0].mxu0
      %v564 = vadd.f32 0.0, %v563
      %v565 = vpop.f32.mrb[0].mxu0
      %v566 = vpop.f32.mrb[0].mxu0
      %v567 = vadd.f32 0.0, %v566
      %v568 = vpop.f32.mrb[0].mxu0
      %569 = vmatprep.mubr.bf16.mxu0 0
      %570 = vmatmul.mubr.bf16.gmra.mrb[0].mxu0 %v480
      %v571 = vpop.f32.mrb[0].mxu0
      %v572 = vadd.f32 0.0, %v571
      %v573 = vpop.f32.mrb[0].mxu0
      %v574 = vpop.f32.mrb[0].mxu0
      %v575 = vadd.f32 0.0, %v574
      %v576 = vpop.f32.mrb[0].mxu0
      %577 = vmatprep.mubr.bf16.mxu0 0
      %578 = vmatmul.mubr.bf16.gmra.mrb[0].mxu0 %v483
      %v579 = vpop.f32.mrb[0].mxu0
      %v580 = vadd.f32 0.0, %v579
      %v581 = vpop.f32.mrb[0].mxu0
      %v582 = vpop.f32.mrb[0].mxu0
      %v583 = vadd.f32 0.0, %v582
      %v584 = vpop.f32.mrb[0].mxu0
      %585 = vmatprep.mubr.bf16.mxu0 0
      %586 = vmatmul.mubr.bf16.gmra.mrb[0].mxu0 %v486
      %v587 = vpop.f32.mrb[0].mxu0
      %v588 = vadd.f32 0.0, %v587
      %v589 = vpop.f32.mrb[0].mxu0
      %v590 = vpop.f32.mrb[0].mxu0
      %v591 = vadd.f32 0.0, %v590
      %v592 = vpop.f32.mrb[0].mxu0
      %593 = vmatprep.mubr.bf16.mxu0 0
      %594 = vmatmul.mubr.bf16.gmra.mrb[0].mxu0 %v489
      %v595 = vpop.f32.mrb[0].mxu0
      %v596 = vadd.f32 0.0, %v595
      %v597 = vpop.f32.mrb[0].mxu0
      %v598 = vpop.f32.mrb[0].mxu0
      %v599 = vadd.f32 0.0, %v598
      %v600 = vpop.f32.mrb[0].mxu0
      %601 = vmatprep.mubr.bf16.mxu0 0
      %602 = vmatmul.mubr.bf16.gmra.mrb[0].mxu0 %v492
      %v603 = vpop.f32.mrb[0].mxu0
      %v604 = vadd.f32 0.0, %v603
      %v605 = vpop.f32.mrb[0].mxu0
      %v606 = vpop.f32.mrb[0].mxu0
      %v607 = vadd.f32 0.0, %v606
      %v608 = vpop.f32.mrb[0].mxu0
      %609 = vmatprep.mubr.bf16.mxu0 0
      %610 = vmatmul.mubr.bf16.gmra.mrb[0].mxu0 %v495
      %v611 = vpop.f32.mrb[0].mxu0
      %v612 = vadd.f32 0.0, %v611
      %v613 = vpop.f32.mrb[0].mxu0
      %v614 = vpop.f32.mrb[0].mxu0
      %v615 = vadd.f32 0.0, %v614
      %v616 = vpop.f32.mrb[0].mxu0
      %617 = vmatprep.mubr.bf16.mxu0 0
      %618 = vmatmul.mubr.bf16.gmra.mrb[0].mxu0 %v498
      %v619 = vpop.f32.mrb[0].mxu0
      %v620 = vadd.f32 0.0, %v619
      %v621 = vpop.f32.mrb[0].mxu0
      %v622 = vpop.f32.mrb[0].mxu0
      %v623 = vadd.f32 0.0, %v622
      %v624 = vpop.f32.mrb[0].mxu0
      %625 = vmatprep.mubr.bf16.mxu0 0
      %626 = vmatmul.mubr.bf16.gmra.mrb[0].mxu0 %v501
      %v627 = vpop.f32.mrb[0].mxu0
      %v628 = vadd.f32 0.0, %v627
      %v629 = vpop.f32.mrb[0].mxu0
      %v630 = vpop.f32.mrb[0].mxu0
      %v631 = vadd.f32 0.0, %v630
      %v632 = vpop.f32.mrb[0].mxu0
      %633 = vmatprep.mubr.bf16.mxu0 0
      %634 = vmatmul.mubr.bf16.gmra.mrb[0].mxu0 %v504
      %v635 = vpop.f32.mrb[0].mxu0
      %v636 = vadd.f32 0.0, %v635
      %v637 = vpop.f32.mrb[0].mxu0
      %v638 = vpop.f32.mrb[0].mxu0
      %v639 = vadd.f32 0.0, %v638
      %v640 = vpop.f32.mrb[0].mxu0
      %641 = vmatprep.mubr.bf16.mxu0 0
      %642 = vmatmul.mubr.bf16.gmra.mrb[0].mxu0 %v507
      %v643 = vpop.f32.mrb[0].mxu0
      %v644 = vadd.f32 0.0, %v643
      %v645 = vpop.f32.mrb[0].mxu0
      %v646 = vpop.f32.mrb[0].mxu0
      %v647 = vadd.f32 0.0, %v646
      %v648 = vpop.f32.mrb[0].mxu0
      %649 = vmatprep.mubr.bf16.mxu0 0
      %650 = vmatmul.mubr.bf16.gmra.mrb[0].mxu0 %v510
      %v651 = vpop.f32.mrb[0].mxu0
      %v652 = vadd.f32 0.0, %v651
      %v653 = vpop.f32.mrb[0].mxu0
      %v654 = vpop.f32.mrb[0].mxu0
      %v655 = vadd.f32 0.0, %v654
      %v656 = vpop.f32.mrb[0].mxu0
      %657 = vmatprep.mubr.bf16.mxu0 0
      %658 = vmatmul.mubr.bf16.gmra.mrb[0].mxu0 %v513
      %v659 = vpop.f32.mrb[0].mxu0
      %v660 = vadd.f32 0.0, %v659
      %v661 = vpop.f32.mrb[0].mxu0
      %v662 = vpop.f32.mrb[0].mxu0
      %v663 = vadd.f32 0.0, %v662
      %v664 = vpop.f32.mrb[0].mxu0
      %665 = vmatprep.mubr.bf16.mxu0 0
      %666 = vmatmul.mubr.bf16.gmra.mrb[0].mxu0 %v516
      %v667 = vpop.f32.mrb[0].mxu0
      %v668 = vadd.f32 0.0, %v667
      %v669 = vpop.f32.mrb[0].mxu0
      %v670 = vpop.f32.mrb[0].mxu0
      %v671 = vadd.f32 0.0, %v670
      %v672 = vpop.f32.mrb[0].mxu0
      %673 = vmatprep.mubr.bf16.mxu0 0
      %674 = vmatmul.mubr.bf16.gmra.mrb[0].mxu0 %v519
      %v675 = vpop.f32.mrb[0].mxu0
      %v676 = vadd.f32 0.0, %v675
      %v677 = vpop.f32.mrb[0].mxu0
      %v678 = vpop.f32.mrb[0].mxu0
      %v679 = vadd.f32 0.0, %v678
      %v680 = vpop.f32.mrb[0].mxu0
      %681 = vdwg.mxu0
      %v682 = vadd.f32 %v296, %v556
      %v683 = vadd.f32 %v297, %v559
      %v684 = vadd.f32 %v298, %v564
      %v685 = vadd.f32 %v299, %v567
      %v686 = vadd.f32 %v300, %v572
      %v687 = vadd.f32 %v301, %v575
      %v688 = vadd.f32 %v302, %v580
      %v689 = vadd.f32 %v303, %v583
      %v690 = vadd.f32 %v304, %v588
      %v691 = vadd.f32 %v305, %v591
      %v692 = vadd.f32 %v306, %v596
      %v693 = vadd.f32 %v307, %v599
      %v694 = vadd.f32 %v308, %v604
      %v695 = vadd.f32 %v309, %v607
      %v696 = vadd.f32 %v310, %v612
      %v697 = vadd.f32 %v311, %v615
      %v698 = vadd.f32 %v312, %v620
      %v699 = vadd.f32 %v313, %v623
      %v700 = vadd.f32 %v314, %v628
      %v701 = vadd.f32 %v315, %v631
      %v702 = vadd.f32 %v316, %v636
      %v703 = vadd.f32 %v317, %v639
      %v704 = vadd.f32 %v318, %v644
      %v705 = vadd.f32 %v319, %v647
      %v706 = vadd.f32 %v320, %v652
      %v707 = vadd.f32 %v321, %v655
      %v708 = vadd.f32 %v322, %v660
      %v709 = vadd.f32 %v323, %v663
      %v710 = vadd.f32 %v324, %v668
      %v711 = vadd.f32 %v325, %v671
      %v712 = vadd.f32 %v326, %v676
      %v713 = vadd.f32 %v327, %v679
      %714 = vst [vmem:[#allocation2] sm:$0xff] %v682
      %715 = vst [vmem:[#allocation2 + $0x8] sm:$0xff] %v683
      %716 = vst [vmem:[#allocation2 + $0x10] sm:$0xff] %v684
      %717 = vst [vmem:[#allocation2 + $0x18] sm:$0xff] %v685
      %718 = vst [vmem:[#allocation2 + $0x20] sm:$0xff] %v686
      %719 = vst [vmem:[#allocation2 + $0x28] sm:$0xff] %v687
      %720 = vst [vmem:[#allocation2 + $0x30] sm:$0xff] %v688
      %721 = vst [vmem:[#allocation2 + $0x38] sm:$0xff] %v689
      %722 = vst [vmem:[#allocation2 + $0x40] sm:$0xff] %v690
      %723 = vst [vmem:[#allocation2 + $0x48] sm:$0xff] %v691
      %724 = vst [vmem:[#allocation2 + $0x50] sm:$0xff] %v692
      %725 = vst [vmem:[#allocation2 + $0x58] sm:$0xff] %v693
      %726 = vst [vmem:[#allocation2 + $0x60] sm:$0xff] %v694
      %727 = vst [vmem:[#allocation2 + $0x68] sm:$0xff] %v695
      %728 = vst [vmem:[#allocation2 + $0x70] sm:$0xff] %v696
      %729 = vst [vmem:[#allocation2 + $0x78] sm:$0xff] %v697
      %730 = vst [vmem:[#allocation2 + $0x80] sm:$0xff] %v698
      %731 = vst [vmem:[#allocation2 + $0x88] sm:$0xff] %v699
      %732 = vst [vmem:[#allocation2 + $0x90] sm:$0xff] %v700
      %733 = vst [vmem:[#allocation2 + $0x98] sm:$0xff] %v701
      %734 = vst [vmem:[#allocation2 + $0xa0] sm:$0xff] %v702
      %735 = vst [vmem:[#allocation2 + $0xa8] sm:$0xff] %v703
      %736 = vst [vmem:[#allocation2 + $0xb0] sm:$0xff] %v704
      %737 = vst [vmem:[#allocation2 + $0xb8] sm:$0xff] %v705
      %738 = vst [vmem:[#allocation2 + $0xc0] sm:$0xff] %v706
      %739 = vst [vmem:[#allocation2 + $0xc8] sm:$0xff] %v707
      %740 = vst [vmem:[#allocation2 + $0xd0] sm:$0xff] %v708
      %741 = vst [vmem:[#allocation2 + $0xd8] sm:$0xff] %v709
      %742 = vst [vmem:[#allocation2 + $0xe0] sm:$0xff] %v710
      %743 = vst [vmem:[#allocation2 + $0xe8] sm:$0xff] %v711
      %744 = vst [vmem:[#allocation2 + $0xf0] sm:$0xff] %v712
      %745 = vst [vmem:[#allocation2 + $0xf8] sm:$0xff] %v713
      // Predicated region
      $region37: #{pspnet_forward.7} parent=31 // pred_check
        %p746 = pneg %p260
      $region38: #{pspnet_forward.7} parent=31 // pred_check_branch
        %748 = sbr.rel (%p746) target = $region40
      $region39: #{pspnet_forward.7} parent=31 // pred_region
        %v749 = vld [vmem:[#allocation2] sm:$0xff]
        %v750 = vld [vmem:[#allocation2 + $0x8] sm:$0xff]
        %v751 = vld [vmem:[#allocation2 + $0x10] sm:$0xff]
        %v752 = vld [vmem:[#allocation2 + $0x18] sm:$0xff]
        %v753 = vld [vmem:[#allocation2 + $0x20] sm:$0xff]
        %v754 = vld [vmem:[#allocation2 + $0x28] sm:$0xff]
        %v755 = vld [vmem:[#allocation2 + $0x30] sm:$0xff]
        %v756 = vld [vmem:[#allocation2 + $0x38] sm:$0xff]
        %v757 = vld [vmem:[#allocation2 + $0x40] sm:$0xff]
        %v758 = vld [vmem:[#allocation2 + $0x48] sm:$0xff]
        %v759 = vld [vmem:[#allocation2 + $0x50] sm:$0xff]
        %v760 = vld [vmem:[#allocation2 + $0x58] sm:$0xff]
        %v761 = vld [vmem:[#allocation2 + $0x60] sm:$0xff]
        %v762 = vld [vmem:[#allocation2 + $0x68] sm:$0xff]
        %v763 = vld [vmem:[#allocation2 + $0x70] sm:$0xff]
        %v764 = vld [vmem:[#allocation2 + $0x78] sm:$0xff]
        %v765 = vld [vmem:[#allocation2 + $0x80] sm:$0xff]
        %v766 = vld [vmem:[#allocation2 + $0x88] sm:$0xff]
        %v767 = vld [vmem:[#allocation2 + $0x90] sm:$0xff]
        %v768 = vld [vmem:[#allocation2 + $0x98] sm:$0xff]
        %v769 = vld [vmem:[#allocation2 + $0xa0] sm:$0xff]
        %v770 = vld [vmem:[#allocation2 + $0xa8] sm:$0xff]
        %v771 = vld [vmem:[#allocation2 + $0xb0] sm:$0xff]
        %v772 = vld [vmem:[#allocation2 + $0xb8] sm:$0xff]
        %v773 = vld [vmem:[#allocation2 + $0xc0] sm:$0xff]
        %v774 = vld [vmem:[#allocation2 + $0xc8] sm:$0xff]
        %v775 = vld [vmem:[#allocation2 + $0xd0] sm:$0xff]
        %v776 = vld [vmem:[#allocation2 + $0xd8] sm:$0xff]
        %v777 = vld [vmem:[#allocation2 + $0xe0] sm:$0xff]
        %v778 = vld [vmem:[#allocation2 + $0xe8] sm:$0xff]
        %v779 = vld [vmem:[#allocation2 + $0xf0] sm:$0xff]
        %v780 = vld [vmem:[#allocation2 + $0xf8] sm:$0xff]
        %v781 = vld [vmem:[%s249] sm:$0x1]
        %v783 = vlaneseq
        %v784 = vshrl.u32 %v783, 7
        %v785 = vsub.s32 0, %v784
        %v786 = vrot.slane %v781, %v785
        %v788 = vadd.f32 %v749, %v786
        %v789 = vadd.f32 %v750, %v786
        %v790 = vadd.f32 %v751, %v786
        %v791 = vadd.f32 %v752, %v786
        %v792 = vadd.f32 %v753, %v786
        %v793 = vadd.f32 %v754, %v786
        %v794 = vadd.f32 %v755, %v786
        %v795 = vadd.f32 %v756, %v786
        %v796 = vadd.f32 %v757, %v786
        %v797 = vadd.f32 %v758, %v786
        %v798 = vadd.f32 %v759, %v786
        %v799 = vadd.f32 %v760, %v786
        %v800 = vadd.f32 %v761, %v786
        %v801 = vadd.f32 %v762, %v786
        %v802 = vadd.f32 %v763, %v786
        %v803 = vadd.f32 %v764, %v786
        %v804 = vadd.f32 %v765, %v786
        %v805 = vadd.f32 %v766, %v786
        %v806 = vadd.f32 %v767, %v786
        %v807 = vadd.f32 %v768, %v786
        %v808 = vadd.f32 %v769, %v786
        %v809 = vadd.f32 %v770, %v786
        %v810 = vadd.f32 %v771, %v786
        %v811 = vadd.f32 %v772, %v786
        %v812 = vadd.f32 %v773, %v786
        %v813 = vadd.f32 %v774, %v786
        %v814 = vadd.f32 %v775, %v786
        %v815 = vadd.f32 %v776, %v786
        %v816 = vadd.f32 %v777, %v786
        %v817 = vadd.f32 %v778, %v786
        %v818 = vadd.f32 %v779, %v786
        %v819 = vadd.f32 %v780, %v786
        %820 = vst [vmem:[%s257] sm:$0xff] %v788
        %821 = vst [vmem:[%s257 + $0x8] sm:$0xff] %v789
        %822 = vst [vmem:[%s257 + $0x10] sm:$0xff] %v790
        %823 = vst [vmem:[%s257 + $0x18] sm:$0xff] %v791
        %824 = vst [vmem:[%s257 + $0x20] sm:$0xff] %v792
        %825 = vst [vmem:[%s257 + $0x28] sm:$0xff] %v793
        %826 = vst [vmem:[%s257 + $0x30] sm:$0xff] %v794
        %827 = vst [vmem:[%s257 + $0x38] sm:$0xff] %v795
        %828 = vst [vmem:[%s257 + $0x40] sm:$0xff] %v796
        %829 = vst [vmem:[%s257 + $0x48] sm:$0xff] %v797
        %830 = vst [vmem:[%s257 + $0x50] sm:$0xff] %v798
        %831 = vst [vmem:[%s257 + $0x58] sm:$0xff] %v799
        %832 = vst [vmem:[%s257 + $0x60] sm:$0xff] %v800
        %833 = vst [vmem:[%s257 + $0x68] sm:$0xff] %v801
        %834 = vst [vmem:[%s257 + $0x70] sm:$0xff] %v802
        %835 = vst [vmem:[%s257 + $0x78] sm:$0xff] %v803
        %836 = vst [vmem:[%s257 + $0x80] sm:$0xff] %v804
        %837 = vst [vmem:[%s257 + $0x88] sm:$0xff] %v805
        %838 = vst [vmem:[%s257 + $0x90] sm:$0xff] %v806
        %839 = vst [vmem:[%s257 + $0x98] sm:$0xff] %v807
        %840 = vst [vmem:[%s257 + $0xa0] sm:$0xff] %v808
        %841 = vst [vmem:[%s257 + $0xa8] sm:$0xff] %v809
        %842 = vst [vmem:[%s257 + $0xb0] sm:$0xff] %v810
        %843 = vst [vmem:[%s257 + $0xb8] sm:$0xff] %v811
        %844 = vst [vmem:[%s257 + $0xc0] sm:$0xff] %v812
        %845 = vst [vmem:[%s257 + $0xc8] sm:$0xff] %v813
        %846 = vst [vmem:[%s257 + $0xd0] sm:$0xff] %v814
        %847 = vst [vmem:[%s257 + $0xd8] sm:$0xff] %v815
        %848 = vst [vmem:[%s257 + $0xe0] sm:$0xff] %v816
        %849 = vst [vmem:[%s257 + $0xe8] sm:$0xff] %v817
        %850 = vst [vmem:[%s257 + $0xf0] sm:$0xff] %v818
        %851 = vst [vmem:[%s257 + $0xf8] sm:$0xff] %v819
      $region40: #{pspnet_forward.7} parent=31 // pred_fallthru
        _
      %s852 = smul.u32 32, %s19
      %p853 = scmp.lt.s32.totalorder %s852, 63
      %s854 = scalar_select %p853, %s852, 63
      %p855 = scmp.lt.s32.totalorder %s20, 0
      %s856 = scalar_select %p855, %s20, 0
      %s857 = sadd.s32 %s856, %s854
      %s858 = smul.addr %s857, 8
      %s859 = scalar_lea.vmem %s3, %s858
      // Predicated region
      $region41: #{pspnet_forward.7} parent=31 // pred_check
        %p860 = pneg %p135
      $region42: #{pspnet_forward.7} parent=31 // pred_check_branch
        %862 = sbr.rel (%p860) target = $region44
      $region43: #{pspnet_forward.7} parent=31 // pred_region
        %s863 = smul.u32 32, %s19
      $region44: #{pspnet_forward.7} parent=31 // pred_fallthru
        _
    $region32: #{pspnet_forward.7} parent=5 // pred_fallthru
      _
    %p864 = scmp.le.s32.totalorder 2, %s9
    // Predicated region
    $region45: #{pspnet_forward.7} parent=5 // pred_check
      %p865 = pneg %p864
    $region46: #{pspnet_forward.7} parent=5 // pred_check_branch
      %867 = sbr.rel (%p865) target = $region48
    $region47: #{pspnet_forward.7} parent=5 // pred_region
      %s868 = ssub.s32 %s9, 2
      // Predicated region
      $region49: #{pspnet_forward.7} parent=47 // pred_check
        %p869 = pneg %p141
      $region50: #{pspnet_forward.7} parent=47 // pred_check_branch
        %871 = sbr.rel (%p869) target = $region52
      $region51: #{pspnet_forward.7} parent=47 // pred_region
        %s872 = smul.u32 32, %s22
        %p873 = scmp.lt.s32.totalorder %s872, 63
        %s874 = scalar_select %p873, %s872, 63
        %p875 = scmp.lt.s32.totalorder %s23, 0
        %s876 = scalar_select %p875, %s23, 0
        %s877 = sadd.s32 %s876, %s874
        %s878 = smul.addr %s877, 8
        %s879 = scalar_lea.vmem %s3, %s878
      $region52: #{pspnet_forward.7} parent=47 // pred_fallthru
        _
    $region48: #{pspnet_forward.7} parent=5 // pred_fallthru
      _
  $region6: #{pspnet_forward.7} parent=0 // loop_footer
    %s13 = sadd.s32 1, %s9
  $region7: #{pspnet_forward.7} parent=0 // loop_footer_branch
    %8 = sbr.rel target = $region3
  $region8: #{pspnet_forward.7} parent=0 // loop_exit
    _

</llo_original>
